<compile_context>
chip_gen: v7x
topology: tpu7x:2x2x1
jax: 0.10.0
libtpu: 0.0.40
codegen_flags: <defaults>
</compile_context>

<pallas_src>
import jax
import jax.numpy as jnp
from jax.experimental import pallas as pl
from jax.experimental.pallas import tpu as pltpu


def _make_fused_lstm_kernel(T, Bp, H, L):
    """Build the fused kernel for static (T, padded-B, H, L)."""

    def kernel(*refs):
        # Inputs: gx0 (T*Bp, 4H), whhT_0 (H, 4H),
        #         then per layer l >= 1: wihT_l (H, 4H), bias_l (1, 4H), whhT_l (H, 4H).
        # Output: out (Bp, H).
        # Scratch (only if L > 1): hseq (T*Bp, H), gbuf (T*Bp, 4H).
        idx = 0
        gx0_ref = refs[idx]; idx += 1
        whhT_refs = [refs[idx]]; idx += 1
        wihT_refs = [None]
        bias_refs = [None]
        for _ in range(1, L):
            wihT_refs.append(refs[idx]); idx += 1
            bias_refs.append(refs[idx]); idx += 1
            whhT_refs.append(refs[idx]); idx += 1
        out_ref = refs[idx]; idx += 1
        if L > 1:
            hseq_ref = refs[idx]; idx += 1
            gbuf_ref = refs[idx]; idx += 1

        def run_layer(gsrc_ref, whhT_ref, write_seq):
            """Time recurrence for one layer.

            gsrc_ref holds the hoisted input-projection gates, time-major and
            flattened to (T*Bp, 4H); per-step work is only h @ Whh^T plus the
            elementwise gate math. Bp is a multiple of 8, so every slice below
            is an aligned sublane block.
            """
            whhT = whhT_ref[...]                        # (H, 4H), loaded once
            h = jnp.zeros((Bp, H), jnp.float32)
            c = jnp.zeros((Bp, H), jnp.float32)
            # T is small and static -> full unroll with static, tile-aligned
            # slices keeps h/c in vregs.
            for t in range(T):
                gx_t = gsrc_ref[t * Bp:(t + 1) * Bp, :]     # (Bp, 4H)
                gates = gx_t + jnp.dot(
                    h, whhT, preferred_element_type=jnp.float32)
                sg = jax.nn.sigmoid(gates)                  # one EUP pass, full width
                i_g = sg[:, 0 * H:1 * H]
                f_g = sg[:, 1 * H:2 * H]
                o_g = sg[:, 3 * H:4 * H]
                g_g = jnp.tanh(gates[:, 2 * H:3 * H])
                c = f_g * c + i_g * g_g
                h = o_g * jnp.tanh(c)
                if write_seq:
                    hseq_ref[t * Bp:(t + 1) * Bp, :] = h
            return h

        # Layer 0: input projection was hoisted into the wrapper (one big
        # XLA/MXU matmul over the whole sequence).
        h_last = run_layer(gx0_ref, whhT_refs[0], write_seq=(L > 1))

        for l in range(1, L):
            # Hoisted input projection for layer l: one (T*Bp, H) x (H, 4H)
            # MXU matmul over the VMEM-resident hidden sequence.
            gbuf_ref[...] = (
                jnp.dot(hseq_ref[...], wihT_refs[l][...],
                        preferred_element_type=jnp.float32)
                + bias_refs[l][...]
            )
            h_last = run_layer(gbuf_ref, whhT_refs[l], write_seq=(l < L - 1))

        # Only the last timestep of the top layer is needed.
        out_ref[...] = h_last

    return kernel


@jax.jit
def linear_lstm_forward(x, params):
    """Equivalent of LinearLSTM.forward: returns lstm_out[:, -1, :].

    x: (B, T, D) float32; params: list of (w_ih, w_hh, b_ih, b_hh) per layer,
    with PyTorch nn.LSTM shapes: w_ih (4H, in), w_hh (4H, H), biases (4H,).
    """
    B, T, D = x.shape
    L = len(params)
    H = params[0][1].shape[1]          # w_hh: (4H, H)
    G = 4 * H

    # Pad batch to a sublane multiple (8). The hardware computes on 8-sublane
    # vregs regardless, so padded rows cost nothing; every per-step slice in
    # the kernel becomes tile-aligned.
    Bp = ((B + 7) // 8) * 8
    if Bp != B:
        x = jnp.pad(x, ((0, Bp - B), (0, 0), (0, 0)))

    # Hoisted layer-0 input projection: one large matmul over all timesteps,
    # produced directly in time-major (t, b, 4H) layout (the layout change is
    # folded into the dot output, no explicit transpose pass over x).
    w_ih0, w_hh0, b_ih0, b_hh0 = params[0]
    gx0 = (jnp.einsum("btd,gd->tbg", x, w_ih0)
           + (b_ih0 + b_hh0)).reshape(T * Bp, G)

    inputs = [gx0, jnp.transpose(w_hh0)]               # whhT_0: (H, 4H)
    for l in range(1, L):
        w_ih, w_hh, b_ih, b_hh = params[l]
        inputs.append(jnp.transpose(w_ih))             # (H, 4H)
        inputs.append((b_ih + b_hh).reshape(1, G))     # (1, 4H)
        inputs.append(jnp.transpose(w_hh))             # (H, 4H)

    # Single grid step: whole arrays are VMEM-resident (all are 2-D).
    in_specs = [pl.BlockSpec(a.shape, lambda i: (0, 0)) for a in inputs]
    out_spec = pl.BlockSpec((Bp, H), lambda i: (0, 0))

    scratch_shapes = []
    if L > 1:
        scratch_shapes = [
            pltpu.VMEM((T * Bp, H), jnp.float32),      # hidden-state sequence
            pltpu.VMEM((T * Bp, G), jnp.float32),      # hoisted gate projections
        ]

    out = pl.pallas_call(
        _make_fused_lstm_kernel(T, Bp, H, L),
        out_shape=jax.ShapeDtypeStruct((Bp, H), jnp.float32),
        grid=(1,),
        in_specs=in_specs,
        out_specs=out_spec,
        scratch_shapes=scratch_shapes,
        compiler_params=pltpu.CompilerParams(
            dimension_semantics=("arbitrary",)),
    )(*inputs)
    return out[:B]


def _reference_forward(x, params):
    """Pure-JAX reference (lax.scan), PyTorch LSTM semantics."""
    seq = x                                   # (B, T, D)
    for (w_ih, w_hh, b_ih, b_hh) in params:
        H = w_hh.shape[1]
        B = seq.shape[0]

        def step(carry, x_t):
            h, c = carry
            gates = x_t @ w_ih.T + h @ w_hh.T + b_ih + b_hh
            i, f, g, o = jnp.split(gates, 4, axis=-1)
            i = jax.nn.sigmoid(i)
            f = jax.nn.sigmoid(f)
            g = jnp.tanh(g)
            o = jax.nn.sigmoid(o)
            c = f * c + i * g
            h = o * jnp.tanh(c)
            return (h, c), h

        h0 = jnp.zeros((B, H), jnp.float32)
        c0 = jnp.zeros((B, H), jnp.float32)
        _, ys = jax.lax.scan(step, (h0, c0), jnp.swapaxes(seq, 0, 1))
        seq = jnp.swapaxes(ys, 0, 1)
    return seq[:, -1, :]


def init_lstm_params(key, input_size, hidden_size, num_layers):
    """Deterministic init matching nn.LSTM shapes: U(-1/sqrt(H), 1/sqrt(H))."""
    k = 1.0 / (hidden_size ** 0.5)
    params = []
    for layer in range(num_layers):
        in_dim = input_size if layer == 0 else hidden_size
        key, k1, k2, k3, k4 = jax.random.split(key, 5)
        w_ih = jax.random.uniform(k1, (4 * hidden_size, in_dim), jnp.float32, -k, k)
        w_hh = jax.random.uniform(k2, (4 * hidden_size, hidden_size), jnp.float32, -k, k)
        b_ih = jax.random.uniform(k3, (4 * hidden_size,), jnp.float32, -k, k)
        b_hh = jax.random.uniform(k4, (4 * hidden_size,), jnp.float32, -k, k)
        params.append((w_ih, w_hh, b_ih, b_hh))
    return params


if __name__ == "__main__":
    # Small shapes consistent with LinearLSTM(input_size=16, hidden=32, layers=2).
    B, T, D, H, L = 2, 8, 16, 32, 2

    key = jax.random.PRNGKey(0)
    key, kx = jax.random.split(key)
    x = jax.random.normal(kx, (B, T, D), jnp.float32)
    params = init_lstm_params(key, D, H, L)

    out = linear_lstm_forward(x, params)
    out = jax.block_until_ready(out)
    assert out.shape == (B, H), out.shape

    ref = _reference_forward(x, params)
    assert jnp.allclose(out, ref, atol=2e-5, rtol=2e-5), (
        float(jnp.max(jnp.abs(out - ref))))

    print("KERNEL_OK")
</pallas_src>

<mosaic_0001>
module attributes {stable_mosaic.version = 11 : i64} {
  func.func @kernel(%arg0: i32, %arg1: memref<64x128xf32, #tpu.memory_space<vmem>>, %arg2: memref<32x128xf32, #tpu.memory_space<vmem>>, %arg3: memref<32x128xf32, #tpu.memory_space<vmem>>, %arg4: memref<1x128xf32, #tpu.memory_space<vmem>>, %arg5: memref<32x128xf32, #tpu.memory_space<vmem>>, %arg6: memref<8x32xf32, #tpu.memory_space<vmem>>, %arg7: memref<64x32xf32, #tpu.memory_space<vmem>>, %arg8: memref<64x128xf32, #tpu.memory_space<vmem>>) attributes {dimension_semantics = [#tpu.dimension_semantics<arbitrary>], iteration_bounds = array<i64: 1>, scalar_prefetch = 0 : i64, scratch_operands = 2 : i64, tpu.core_type = #tpu.core_type<tc>, window_params = [{pipeline_mode = #tpu.pipeline_mode<synchronous>, transform_indices = @transform_0, window_bounds = array<i64: 64, 128>}, {pipeline_mode = #tpu.pipeline_mode<synchronous>, transform_indices = @transform_1, window_bounds = array<i64: 32, 128>}, {pipeline_mode = #tpu.pipeline_mode<synchronous>, transform_indices = @transform_2, window_bounds = array<i64: 32, 128>}, {pipeline_mode = #tpu.pipeline_mode<synchronous>, transform_indices = @transform_3, window_bounds = array<i64: 1, 128>}, {pipeline_mode = #tpu.pipeline_mode<synchronous>, transform_indices = @transform_4, window_bounds = array<i64: 32, 128>}, {pipeline_mode = #tpu.pipeline_mode<synchronous>, transform_indices = @transform_5, window_bounds = array<i64: 8, 32>}]} {
    %c0 = arith.constant 0 : index
    %c0_0 = arith.constant 0 : index
    %0 = vector.load %arg2[%c0, %c0_0] : memref<32x128xf32, #tpu.memory_space<vmem>>, vector<32x128xf32>
    %cst = arith.constant 0.000000e+00 : f32
    %1 = vector.broadcast %cst : f32 to vector<8x32xf32>
    %cst_1 = arith.constant 0.000000e+00 : f32
    %2 = vector.broadcast %cst_1 : f32 to vector<8x32xf32>
    %c0_2 = arith.constant 0 : index
    %c0_3 = arith.constant 0 : index
    %3 = vector.load %arg1[%c0_2, %c0_3] : memref<64x128xf32, #tpu.memory_space<vmem>>, vector<8x128xf32>
    %cst_4 = arith.constant dense<0.000000e+00> : vector<8x128xf32>
    %4 = tpu.matmul %1, %0, %cst_4 {dimension_numbers = #tpu.dot_dimension_numbers<[1], [0], [0], [1], [0, 0, 1, 1], [], []>} : vector<8x32xf32>, vector<32x128xf32>, vector<8x128xf32> -> vector<8x128xf32>
    %5 = arith.addf %3, %4 : vector<8x128xf32>
    %6 = arith.negf %5 : vector<8x128xf32>
    %7 = math.exp %6 : vector<8x128xf32>
    %cst_5 = arith.constant 1.000000e+00 : f32
    %8 = vector.broadcast %cst_5 : f32 to vector<8x128xf32>
    %9 = arith.addf %8, %7 : vector<8x128xf32>
    %10 = arith.divf %8, %9 : vector<8x128xf32>
    %11 = vector.extract_strided_slice %10 {offsets = [0, 0], sizes = [8, 32], strides = [1, 1]} : vector<8x128xf32> to vector<8x32xf32>
    %12 = vector.extract_strided_slice %10 {offsets = [0, 32], sizes = [8, 32], strides = [1, 1]} : vector<8x128xf32> to vector<8x32xf32>
    %13 = vector.extract_strided_slice %10 {offsets = [0, 96], sizes = [8, 32], strides = [1, 1]} : vector<8x128xf32> to vector<8x32xf32>
    %14 = vector.extract_strided_slice %5 {offsets = [0, 64], sizes = [8, 32], strides = [1, 1]} : vector<8x128xf32> to vector<8x32xf32>
    %15 = math.tanh %14 : vector<8x32xf32>
    %16 = arith.mulf %12, %2 : vector<8x32xf32>
    %17 = arith.mulf %11, %15 : vector<8x32xf32>
    %18 = arith.addf %16, %17 : vector<8x32xf32>
    %19 = math.tanh %18 : vector<8x32xf32>
    %20 = arith.mulf %13, %19 : vector<8x32xf32>
    %c0_6 = arith.constant 0 : index
    %c0_7 = arith.constant 0 : index
    %21 = vector.load %arg7[%c0_6, %c0_7] : memref<64x32xf32, #tpu.memory_space<vmem>>, vector<8x32xf32>
    tpu.vector_store %arg7[%c0_6, %c0_7], %20 {strides = array<i32>} : memref<64x32xf32, #tpu.memory_space<vmem>>, vector<8x32xf32>,
    %c8 = arith.constant 8 : index
    %c0_8 = arith.constant 0 : index
    %22 = vector.load %arg1[%c8, %c0_8] : memref<64x128xf32, #tpu.memory_space<vmem>>, vector<8x128xf32>
    %cst_9 = arith.constant dense<0.000000e+00> : vector<8x128xf32>
    %23 = tpu.matmul %20, %0, %cst_9 {dimension_numbers = #tpu.dot_dimension_numbers<[1], [0], [0], [1], [0, 0, 1, 1], [], []>} : vector<8x32xf32>, vector<32x128xf32>, vector<8x128xf32> -> vector<8x128xf32>
    %24 = arith.addf %22, %23 : vector<8x128xf32>
    %25 = arith.negf %24 : vector<8x128xf32>
    %26 = math.exp %25 : vector<8x128xf32>
    %cst_10 = arith.constant 1.000000e+00 : f32
    %27 = vector.broadcast %cst_10 : f32 to vector<8x128xf32>
    %28 = arith.addf %27, %26 : vector<8x128xf32>
    %29 = arith.divf %27, %28 : vector<8x128xf32>
    %30 = vector.extract_strided_slice %29 {offsets = [0, 0], sizes = [8, 32], strides = [1, 1]} : vector<8x128xf32> to vector<8x32xf32>
    %31 = vector.extract_strided_slice %29 {offsets = [0, 32], sizes = [8, 32], strides = [1, 1]} : vector<8x128xf32> to vector<8x32xf32>
    %32 = vector.extract_strided_slice %29 {offsets = [0, 96], sizes = [8, 32], strides = [1, 1]} : vector<8x128xf32> to vector<8x32xf32>
    %33 = vector.extract_strided_slice %24 {offsets = [0, 64], sizes = [8, 32], strides = [1, 1]} : vector<8x128xf32> to vector<8x32xf32>
    %34 = math.tanh %33 : vector<8x32xf32>
    %35 = arith.mulf %31, %18 : vector<8x32xf32>
    %36 = arith.mulf %30, %34 : vector<8x32xf32>
    %37 = arith.addf %35, %36 : vector<8x32xf32>
    %38 = math.tanh %37 : vector<8x32xf32>
    %39 = arith.mulf %32, %38 : vector<8x32xf32>
    %c8_11 = arith.constant 8 : index
    %c0_12 = arith.constant 0 : index
    %40 = vector.load %arg7[%c8_11, %c0_12] : memref<64x32xf32, #tpu.memory_space<vmem>>, vector<8x32xf32>
    tpu.vector_store %arg7[%c8_11, %c0_12], %39 {strides = array<i32>} : memref<64x32xf32, #tpu.memory_space<vmem>>, vector<8x32xf32>,
    %c16 = arith.constant 16 : index
    %c0_13 = arith.constant 0 : index
    %41 = vector.load %arg1[%c16, %c0_13] : memref<64x128xf32, #tpu.memory_space<vmem>>, vector<8x128xf32>
    %cst_14 = arith.constant dense<0.000000e+00> : vector<8x128xf32>
    %42 = tpu.matmul %39, %0, %cst_14 {dimension_numbers = #tpu.dot_dimension_numbers<[1], [0], [0], [1], [0, 0, 1, 1], [], []>} : vector<8x32xf32>, vector<32x128xf32>, vector<8x128xf32> -> vector<8x128xf32>
    %43 = arith.addf %41, %42 : vector<8x128xf32>
    %44 = arith.negf %43 : vector<8x128xf32>
    %45 = math.exp %44 : vector<8x128xf32>
    %cst_15 = arith.constant 1.000000e+00 : f32
    %46 = vector.broadcast %cst_15 : f32 to vector<8x128xf32>
    %47 = arith.addf %46, %45 : vector<8x128xf32>
    %48 = arith.divf %46, %47 : vector<8x128xf32>
    %49 = vector.extract_strided_slice %48 {offsets = [0, 0], sizes = [8, 32], strides = [1, 1]} : vector<8x128xf32> to vector<8x32xf32>
    %50 = vector.extract_strided_slice %48 {offsets = [0, 32], sizes = [8, 32], strides = [1, 1]} : vector<8x128xf32> to vector<8x32xf32>
    %51 = vector.extract_strided_slice %48 {offsets = [0, 96], sizes = [8, 32], strides = [1, 1]} : vector<8x128xf32> to vector<8x32xf32>
    %52 = vector.extract_strided_slice %43 {offsets = [0, 64], sizes = [8, 32], strides = [1, 1]} : vector<8x128xf32> to vector<8x32xf32>
    %53 = math.tanh %52 : vector<8x32xf32>
    %54 = arith.mulf %50, %37 : vector<8x32xf32>
    %55 = arith.mulf %49, %53 : vector<8x32xf32>
    %56 = arith.addf %54, %55 : vector<8x32xf32>
    %57 = math.tanh %56 : vector<8x32xf32>
    %58 = arith.mulf %51, %57 : vector<8x32xf32>
    %c16_16 = arith.constant 16 : index
    %c0_17 = arith.constant 0 : index
    %59 = vector.load %arg7[%c16_16, %c0_17] : memref<64x32xf32, #tpu.memory_space<vmem>>, vector<8x32xf32>
    tpu.vector_store %arg7[%c16_16, %c0_17], %58 {strides = array<i32>} : memref<64x32xf32, #tpu.memory_space<vmem>>, vector<8x32xf32>,
    %c24 = arith.constant 24 : index
    %c0_18 = arith.constant 0 : index
    %60 = vector.load %arg1[%c24, %c0_18] : memref<64x128xf32, #tpu.memory_space<vmem>>, vector<8x128xf32>
    %cst_19 = arith.constant dense<0.000000e+00> : vector<8x128xf32>
    %61 = tpu.matmul %58, %0, %cst_19 {dimension_numbers = #tpu.dot_dimension_numbers<[1], [0], [0], [1], [0, 0, 1, 1], [], []>} : vector<8x32xf32>, vector<32x128xf32>, vector<8x128xf32> -> vector<8x128xf32>
    %62 = arith.addf %60, %61 : vector<8x128xf32>
    %63 = arith.negf %62 : vector<8x128xf32>
    %64 = math.exp %63 : vector<8x128xf32>
    %cst_20 = arith.constant 1.000000e+00 : f32
    %65 = vector.broadcast %cst_20 : f32 to vector<8x128xf32>
    %66 = arith.addf %65, %64 : vector<8x128xf32>
    %67 = arith.divf %65, %66 : vector<8x128xf32>
    %68 = vector.extract_strided_slice %67 {offsets = [0, 0], sizes = [8, 32], strides = [1, 1]} : vector<8x128xf32> to vector<8x32xf32>
    %69 = vector.extract_strided_slice %67 {offsets = [0, 32], sizes = [8, 32], strides = [1, 1]} : vector<8x128xf32> to vector<8x32xf32>
    %70 = vector.extract_strided_slice %67 {offsets = [0, 96], sizes = [8, 32], strides = [1, 1]} : vector<8x128xf32> to vector<8x32xf32>
    %71 = vector.extract_strided_slice %62 {offsets = [0, 64], sizes = [8, 32], strides = [1, 1]} : vector<8x128xf32> to vector<8x32xf32>
    %72 = math.tanh %71 : vector<8x32xf32>
    %73 = arith.mulf %69, %56 : vector<8x32xf32>
    %74 = arith.mulf %68, %72 : vector<8x32xf32>
    %75 = arith.addf %73, %74 : vector<8x32xf32>
    %76 = math.tanh %75 : vector<8x32xf32>
    %77 = arith.mulf %70, %76 : vector<8x32xf32>
    %c24_21 = arith.constant 24 : index
    %c0_22 = arith.constant 0 : index
    %78 = vector.load %arg7[%c24_21, %c0_22] : memref<64x32xf32, #tpu.memory_space<vmem>>, vector<8x32xf32>
    tpu.vector_store %arg7[%c24_21, %c0_22], %77 {strides = array<i32>} : memref<64x32xf32, #tpu.memory_space<vmem>>, vector<8x32xf32>,
    %c32 = arith.constant 32 : index
    %c0_23 = arith.constant 0 : index
    %79 = vector.load %arg1[%c32, %c0_23] : memref<64x128xf32, #tpu.memory_space<vmem>>, vector<8x128xf32>
    %cst_24 = arith.constant dense<0.000000e+00> : vector<8x128xf32>
    %80 = tpu.matmul %77, %0, %cst_24 {dimension_numbers = #tpu.dot_dimension_numbers<[1], [0], [0], [1], [0, 0, 1, 1], [], []>} : vector<8x32xf32>, vector<32x128xf32>, vector<8x128xf32> -> vector<8x128xf32>
    %81 = arith.addf %79, %80 : vector<8x128xf32>
    %82 = arith.negf %81 : vector<8x128xf32>
    %83 = math.exp %82 : vector<8x128xf32>
    %cst_25 = arith.constant 1.000000e+00 : f32
    %84 = vector.broadcast %cst_25 : f32 to vector<8x128xf32>
    %85 = arith.addf %84, %83 : vector<8x128xf32>
    %86 = arith.divf %84, %85 : vector<8x128xf32>
    %87 = vector.extract_strided_slice %86 {offsets = [0, 0], sizes = [8, 32], strides = [1, 1]} : vector<8x128xf32> to vector<8x32xf32>
    %88 = vector.extract_strided_slice %86 {offsets = [0, 32], sizes = [8, 32], strides = [1, 1]} : vector<8x128xf32> to vector<8x32xf32>
    %89 = vector.extract_strided_slice %86 {offsets = [0, 96], sizes = [8, 32], strides = [1, 1]} : vector<8x128xf32> to vector<8x32xf32>
    %90 = vector.extract_strided_slice %81 {offsets = [0, 64], sizes = [8, 32], strides = [1, 1]} : vector<8x128xf32> to vector<8x32xf32>
    %91 = math.tanh %90 : vector<8x32xf32>
    %92 = arith.mulf %88, %75 : vector<8x32xf32>
    %93 = arith.mulf %87, %91 : vector<8x32xf32>
    %94 = arith.addf %92, %93 : vector<8x32xf32>
    %95 = math.tanh %94 : vector<8x32xf32>
    %96 = arith.mulf %89, %95 : vector<8x32xf32>
    %c32_26 = arith.constant 32 : index
    %c0_27 = arith.constant 0 : index
    %97 = vector.load %arg7[%c32_26, %c0_27] : memref<64x32xf32, #tpu.memory_space<vmem>>, vector<8x32xf32>
    tpu.vector_store %arg7[%c32_26, %c0_27], %96 {strides = array<i32>} : memref<64x32xf32, #tpu.memory_space<vmem>>, vector<8x32xf32>,
    %c40 = arith.constant 40 : index
    %c0_28 = arith.constant 0 : index
    %98 = vector.load %arg1[%c40, %c0_28] : memref<64x128xf32, #tpu.memory_space<vmem>>, vector<8x128xf32>
    %cst_29 = arith.constant dense<0.000000e+00> : vector<8x128xf32>
    %99 = tpu.matmul %96, %0, %cst_29 {dimension_numbers = #tpu.dot_dimension_numbers<[1], [0], [0], [1], [0, 0, 1, 1], [], []>} : vector<8x32xf32>, vector<32x128xf32>, vector<8x128xf32> -> vector<8x128xf32>
    %100 = arith.addf %98, %99 : vector<8x128xf32>
    %101 = arith.negf %100 : vector<8x128xf32>
    %102 = math.exp %101 : vector<8x128xf32>
    %cst_30 = arith.constant 1.000000e+00 : f32
    %103 = vector.broadcast %cst_30 : f32 to vector<8x128xf32>
    %104 = arith.addf %103, %102 : vector<8x128xf32>
    %105 = arith.divf %103, %104 : vector<8x128xf32>
    %106 = vector.extract_strided_slice %105 {offsets = [0, 0], sizes = [8, 32], strides = [1, 1]} : vector<8x128xf32> to vector<8x32xf32>
    %107 = vector.extract_strided_slice %105 {offsets = [0, 32], sizes = [8, 32], strides = [1, 1]} : vector<8x128xf32> to vector<8x32xf32>
    %108 = vector.extract_strided_slice %105 {offsets = [0, 96], sizes = [8, 32], strides = [1, 1]} : vector<8x128xf32> to vector<8x32xf32>
    %109 = vector.extract_strided_slice %100 {offsets = [0, 64], sizes = [8, 32], strides = [1, 1]} : vector<8x128xf32> to vector<8x32xf32>
    %110 = math.tanh %109 : vector<8x32xf32>
    %111 = arith.mulf %107, %94 : vector<8x32xf32>
    %112 = arith.mulf %106, %110 : vector<8x32xf32>
    %113 = arith.addf %111, %112 : vector<8x32xf32>
    %114 = math.tanh %113 : vector<8x32xf32>
    %115 = arith.mulf %108, %114 : vector<8x32xf32>
    %c40_31 = arith.constant 40 : index
    %c0_32 = arith.constant 0 : index
    %116 = vector.load %arg7[%c40_31, %c0_32] : memref<64x32xf32, #tpu.memory_space<vmem>>, vector<8x32xf32>
    tpu.vector_store %arg7[%c40_31, %c0_32], %115 {strides = array<i32>} : memref<64x32xf32, #tpu.memory_space<vmem>>, vector<8x32xf32>,
    %c48 = arith.constant 48 : index
    %c0_33 = arith.constant 0 : index
    %117 = vector.load %arg1[%c48, %c0_33] : memref<64x128xf32, #tpu.memory_space<vmem>>, vector<8x128xf32>
    %cst_34 = arith.constant dense<0.000000e+00> : vector<8x128xf32>
    %118 = tpu.matmul %115, %0, %cst_34 {dimension_numbers = #tpu.dot_dimension_numbers<[1], [0], [0], [1], [0, 0, 1, 1], [], []>} : vector<8x32xf32>, vector<32x128xf32>, vector<8x128xf32> -> vector<8x128xf32>
    %119 = arith.addf %117, %118 : vector<8x128xf32>
    %120 = arith.negf %119 : vector<8x128xf32>
    %121 = math.exp %120 : vector<8x128xf32>
    %cst_35 = arith.constant 1.000000e+00 : f32
    %122 = vector.broadcast %cst_35 : f32 to vector<8x128xf32>
    %123 = arith.addf %122, %121 : vector<8x128xf32>
    %124 = arith.divf %122, %123 : vector<8x128xf32>
    %125 = vector.extract_strided_slice %124 {offsets = [0, 0], sizes = [8, 32], strides = [1, 1]} : vector<8x128xf32> to vector<8x32xf32>
    %126 = vector.extract_strided_slice %124 {offsets = [0, 32], sizes = [8, 32], strides = [1, 1]} : vector<8x128xf32> to vector<8x32xf32>
    %127 = vector.extract_strided_slice %124 {offsets = [0, 96], sizes = [8, 32], strides = [1, 1]} : vector<8x128xf32> to vector<8x32xf32>
    %128 = vector.extract_strided_slice %119 {offsets = [0, 64], sizes = [8, 32], strides = [1, 1]} : vector<8x128xf32> to vector<8x32xf32>
    %129 = math.tanh %128 : vector<8x32xf32>
    %130 = arith.mulf %126, %113 : vector<8x32xf32>
    %131 = arith.mulf %125, %129 : vector<8x32xf32>
    %132 = arith.addf %130, %131 : vector<8x32xf32>
    %133 = math.tanh %132 : vector<8x32xf32>
    %134 = arith.mulf %127, %133 : vector<8x32xf32>
    %c48_36 = arith.constant 48 : index
    %c0_37 = arith.constant 0 : index
    %135 = vector.load %arg7[%c48_36, %c0_37] : memref<64x32xf32, #tpu.memory_space<vmem>>, vector<8x32xf32>
    tpu.vector_store %arg7[%c48_36, %c0_37], %134 {strides = array<i32>} : memref<64x32xf32, #tpu.memory_space<vmem>>, vector<8x32xf32>,
    %c56 = arith.constant 56 : index
    %c0_38 = arith.constant 0 : index
    %136 = vector.load %arg1[%c56, %c0_38] : memref<64x128xf32, #tpu.memory_space<vmem>>, vector<8x128xf32>
    %cst_39 = arith.constant dense<0.000000e+00> : vector<8x128xf32>
    %137 = tpu.matmul %134, %0, %cst_39 {dimension_numbers = #tpu.dot_dimension_numbers<[1], [0], [0], [1], [0, 0, 1, 1], [], []>} : vector<8x32xf32>, vector<32x128xf32>, vector<8x128xf32> -> vector<8x128xf32>
    %138 = arith.addf %136, %137 : vector<8x128xf32>
    %139 = arith.negf %138 : vector<8x128xf32>
    %140 = math.exp %139 : vector<8x128xf32>
    %cst_40 = arith.constant 1.000000e+00 : f32
    %141 = vector.broadcast %cst_40 : f32 to vector<8x128xf32>
    %142 = arith.addf %141, %140 : vector<8x128xf32>
    %143 = arith.divf %141, %142 : vector<8x128xf32>
    %144 = vector.extract_strided_slice %143 {offsets = [0, 0], sizes = [8, 32], strides = [1, 1]} : vector<8x128xf32> to vector<8x32xf32>
    %145 = vector.extract_strided_slice %143 {offsets = [0, 32], sizes = [8, 32], strides = [1, 1]} : vector<8x128xf32> to vector<8x32xf32>
    %146 = vector.extract_strided_slice %143 {offsets = [0, 96], sizes = [8, 32], strides = [1, 1]} : vector<8x128xf32> to vector<8x32xf32>
    %147 = vector.extract_strided_slice %138 {offsets = [0, 64], sizes = [8, 32], strides = [1, 1]} : vector<8x128xf32> to vector<8x32xf32>
    %148 = math.tanh %147 : vector<8x32xf32>
    %149 = arith.mulf %145, %132 : vector<8x32xf32>
    %150 = arith.mulf %144, %148 : vector<8x32xf32>
    %151 = arith.addf %149, %150 : vector<8x32xf32>
    %152 = math.tanh %151 : vector<8x32xf32>
    %153 = arith.mulf %146, %152 : vector<8x32xf32>
    %c56_41 = arith.constant 56 : index
    %c0_42 = arith.constant 0 : index
    %154 = vector.load %arg7[%c56_41, %c0_42] : memref<64x32xf32, #tpu.memory_space<vmem>>, vector<8x32xf32>
    tpu.vector_store %arg7[%c56_41, %c0_42], %153 {strides = array<i32>} : memref<64x32xf32, #tpu.memory_space<vmem>>, vector<8x32xf32>,
    %c0_43 = arith.constant 0 : index
    %c0_44 = arith.constant 0 : index
    %155 = vector.load %arg7[%c0_43, %c0_44] : memref<64x32xf32, #tpu.memory_space<vmem>>, vector<64x32xf32>
    %c0_45 = arith.constant 0 : index
    %c0_46 = arith.constant 0 : index
    %156 = vector.load %arg3[%c0_45, %c0_46] : memref<32x128xf32, #tpu.memory_space<vmem>>, vector<32x128xf32>
    %cst_47 = arith.constant dense<0.000000e+00> : vector<64x128xf32>
    %157 = tpu.matmul %155, %156, %cst_47 {dimension_numbers = #tpu.dot_dimension_numbers<[1], [0], [0], [1], [0, 0, 1, 1], [], []>} : vector<64x32xf32>, vector<32x128xf32>, vector<64x128xf32> -> vector<64x128xf32>
    %c0_48 = arith.constant 0 : index
    %c0_49 = arith.constant 0 : index
    %158 = vector.load %arg4[%c0_48, %c0_49] : memref<1x128xf32, #tpu.memory_space<vmem>>, vector<1x128xf32>
    %159 = vector.broadcast %158 : vector<1x128xf32> to vector<64x128xf32>
    %160 = arith.addf %157, %159 : vector<64x128xf32>
    %c0_50 = arith.constant 0 : index
    %c0_51 = arith.constant 0 : index
    %161 = vector.load %arg8[%c0_50, %c0_51] : memref<64x128xf32, #tpu.memory_space<vmem>>, vector<64x128xf32>
    tpu.vector_store %arg8[%c0_50, %c0_51], %160 {strides = array<i32>} : memref<64x128xf32, #tpu.memory_space<vmem>>, vector<64x128xf32>,
    %c0_52 = arith.constant 0 : index
    %c0_53 = arith.constant 0 : index
    %162 = vector.load %arg5[%c0_52, %c0_53] : memref<32x128xf32, #tpu.memory_space<vmem>>, vector<32x128xf32>
    %cst_54 = arith.constant 0.000000e+00 : f32
    %163 = vector.broadcast %cst_54 : f32 to vector<8x32xf32>
    %cst_55 = arith.constant 0.000000e+00 : f32
    %164 = vector.broadcast %cst_55 : f32 to vector<8x32xf32>
    %c0_56 = arith.constant 0 : index
    %c0_57 = arith.constant 0 : index
    %165 = vector.load %arg8[%c0_56, %c0_57] : memref<64x128xf32, #tpu.memory_space<vmem>>, vector<8x128xf32>
    %cst_58 = arith.constant dense<0.000000e+00> : vector<8x128xf32>
    %166 = tpu.matmul %163, %162, %cst_58 {dimension_numbers = #tpu.dot_dimension_numbers<[1], [0], [0], [1], [0, 0, 1, 1], [], []>} : vector<8x32xf32>, vector<32x128xf32>, vector<8x128xf32> -> vector<8x128xf32>
    %167 = arith.addf %165, %166 : vector<8x128xf32>
    %168 = arith.negf %167 : vector<8x128xf32>
    %169 = math.exp %168 : vector<8x128xf32>
    %cst_59 = arith.constant 1.000000e+00 : f32
    %170 = vector.broadcast %cst_59 : f32 to vector<8x128xf32>
    %171 = arith.addf %170, %169 : vector<8x128xf32>
    %172 = arith.divf %170, %171 : vector<8x128xf32>
    %173 = vector.extract_strided_slice %172 {offsets = [0, 0], sizes = [8, 32], strides = [1, 1]} : vector<8x128xf32> to vector<8x32xf32>
    %174 = vector.extract_strided_slice %172 {offsets = [0, 32], sizes = [8, 32], strides = [1, 1]} : vector<8x128xf32> to vector<8x32xf32>
    %175 = vector.extract_strided_slice %172 {offsets = [0, 96], sizes = [8, 32], strides = [1, 1]} : vector<8x128xf32> to vector<8x32xf32>
    %176 = vector.extract_strided_slice %167 {offsets = [0, 64], sizes = [8, 32], strides = [1, 1]} : vector<8x128xf32> to vector<8x32xf32>
    %177 = math.tanh %176 : vector<8x32xf32>
    %178 = arith.mulf %174, %164 : vector<8x32xf32>
    %179 = arith.mulf %173, %177 : vector<8x32xf32>
    %180 = arith.addf %178, %179 : vector<8x32xf32>
    %181 = math.tanh %180 : vector<8x32xf32>
    %182 = arith.mulf %175, %181 : vector<8x32xf32>
    %c8_60 = arith.constant 8 : index
    %c0_61 = arith.constant 0 : index
    %183 = vector.load %arg8[%c8_60, %c0_61] : memref<64x128xf32, #tpu.memory_space<vmem>>, vector<8x128xf32>
    %cst_62 = arith.constant dense<0.000000e+00> : vector<8x128xf32>
    %184 = tpu.matmul %182, %162, %cst_62 {dimension_numbers = #tpu.dot_dimension_numbers<[1], [0], [0], [1], [0, 0, 1, 1], [], []>} : vector<8x32xf32>, vector<32x128xf32>, vector<8x128xf32> -> vector<8x128xf32>
    %185 = arith.addf %183, %184 : vector<8x128xf32>
    %186 = arith.negf %185 : vector<8x128xf32>
    %187 = math.exp %186 : vector<8x128xf32>
    %cst_63 = arith.constant 1.000000e+00 : f32
    %188 = vector.broadcast %cst_63 : f32 to vector<8x128xf32>
    %189 = arith.addf %188, %187 : vector<8x128xf32>
    %190 = arith.divf %188, %189 : vector<8x128xf32>
    %191 = vector.extract_strided_slice %190 {offsets = [0, 0], sizes = [8, 32], strides = [1, 1]} : vector<8x128xf32> to vector<8x32xf32>
    %192 = vector.extract_strided_slice %190 {offsets = [0, 32], sizes = [8, 32], strides = [1, 1]} : vector<8x128xf32> to vector<8x32xf32>
    %193 = vector.extract_strided_slice %190 {offsets = [0, 96], sizes = [8, 32], strides = [1, 1]} : vector<8x128xf32> to vector<8x32xf32>
    %194 = vector.extract_strided_slice %185 {offsets = [0, 64], sizes = [8, 32], strides = [1, 1]} : vector<8x128xf32> to vector<8x32xf32>
    %195 = math.tanh %194 : vector<8x32xf32>
    %196 = arith.mulf %192, %180 : vector<8x32xf32>
    %197 = arith.mulf %191, %195 : vector<8x32xf32>
    %198 = arith.addf %196, %197 : vector<8x32xf32>
    %199 = math.tanh %198 : vector<8x32xf32>
    %200 = arith.mulf %193, %199 : vector<8x32xf32>
    %c16_64 = arith.constant 16 : index
    %c0_65 = arith.constant 0 : index
    %201 = vector.load %arg8[%c16_64, %c0_65] : memref<64x128xf32, #tpu.memory_space<vmem>>, vector<8x128xf32>
    %cst_66 = arith.constant dense<0.000000e+00> : vector<8x128xf32>
    %202 = tpu.matmul %200, %162, %cst_66 {dimension_numbers = #tpu.dot_dimension_numbers<[1], [0], [0], [1], [0, 0, 1, 1], [], []>} : vector<8x32xf32>, vector<32x128xf32>, vector<8x128xf32> -> vector<8x128xf32>
    %203 = arith.addf %201, %202 : vector<8x128xf32>
    %204 = arith.negf %203 : vector<8x128xf32>
    %205 = math.exp %204 : vector<8x128xf32>
    %cst_67 = arith.constant 1.000000e+00 : f32
    %206 = vector.broadcast %cst_67 : f32 to vector<8x128xf32>
    %207 = arith.addf %206, %205 : vector<8x128xf32>
    %208 = arith.divf %206, %207 : vector<8x128xf32>
    %209 = vector.extract_strided_slice %208 {offsets = [0, 0], sizes = [8, 32], strides = [1, 1]} : vector<8x128xf32> to vector<8x32xf32>
    %210 = vector.extract_strided_slice %208 {offsets = [0, 32], sizes = [8, 32], strides = [1, 1]} : vector<8x128xf32> to vector<8x32xf32>
    %211 = vector.extract_strided_slice %208 {offsets = [0, 96], sizes = [8, 32], strides = [1, 1]} : vector<8x128xf32> to vector<8x32xf32>
    %212 = vector.extract_strided_slice %203 {offsets = [0, 64], sizes = [8, 32], strides = [1, 1]} : vector<8x128xf32> to vector<8x32xf32>
    %213 = math.tanh %212 : vector<8x32xf32>
    %214 = arith.mulf %210, %198 : vector<8x32xf32>
    %215 = arith.mulf %209, %213 : vector<8x32xf32>
    %216 = arith.addf %214, %215 : vector<8x32xf32>
    %217 = math.tanh %216 : vector<8x32xf32>
    %218 = arith.mulf %211, %217 : vector<8x32xf32>
    %c24_68 = arith.constant 24 : index
    %c0_69 = arith.constant 0 : index
    %219 = vector.load %arg8[%c24_68, %c0_69] : memref<64x128xf32, #tpu.memory_space<vmem>>, vector<8x128xf32>
    %cst_70 = arith.constant dense<0.000000e+00> : vector<8x128xf32>
    %220 = tpu.matmul %218, %162, %cst_70 {dimension_numbers = #tpu.dot_dimension_numbers<[1], [0], [0], [1], [0, 0, 1, 1], [], []>} : vector<8x32xf32>, vector<32x128xf32>, vector<8x128xf32> -> vector<8x128xf32>
    %221 = arith.addf %219, %220 : vector<8x128xf32>
    %222 = arith.negf %221 : vector<8x128xf32>
    %223 = math.exp %222 : vector<8x128xf32>
    %cst_71 = arith.constant 1.000000e+00 : f32
    %224 = vector.broadcast %cst_71 : f32 to vector<8x128xf32>
    %225 = arith.addf %224, %223 : vector<8x128xf32>
    %226 = arith.divf %224, %225 : vector<8x128xf32>
    %227 = vector.extract_strided_slice %226 {offsets = [0, 0], sizes = [8, 32], strides = [1, 1]} : vector<8x128xf32> to vector<8x32xf32>
    %228 = vector.extract_strided_slice %226 {offsets = [0, 32], sizes = [8, 32], strides = [1, 1]} : vector<8x128xf32> to vector<8x32xf32>
    %229 = vector.extract_strided_slice %226 {offsets = [0, 96], sizes = [8, 32], strides = [1, 1]} : vector<8x128xf32> to vector<8x32xf32>
    %230 = vector.extract_strided_slice %221 {offsets = [0, 64], sizes = [8, 32], strides = [1, 1]} : vector<8x128xf32> to vector<8x32xf32>
    %231 = math.tanh %230 : vector<8x32xf32>
    %232 = arith.mulf %228, %216 : vector<8x32xf32>
    %233 = arith.mulf %227, %231 : vector<8x32xf32>
    %234 = arith.addf %232, %233 : vector<8x32xf32>
    %235 = math.tanh %234 : vector<8x32xf32>
    %236 = arith.mulf %229, %235 : vector<8x32xf32>
    %c32_72 = arith.constant 32 : index
    %c0_73 = arith.constant 0 : index
    %237 = vector.load %arg8[%c32_72, %c0_73] : memref<64x128xf32, #tpu.memory_space<vmem>>, vector<8x128xf32>
    %cst_74 = arith.constant dense<0.000000e+00> : vector<8x128xf32>
    %238 = tpu.matmul %236, %162, %cst_74 {dimension_numbers = #tpu.dot_dimension_numbers<[1], [0], [0], [1], [0, 0, 1, 1], [], []>} : vector<8x32xf32>, vector<32x128xf32>, vector<8x128xf32> -> vector<8x128xf32>
    %239 = arith.addf %237, %238 : vector<8x128xf32>
    %240 = arith.negf %239 : vector<8x128xf32>
    %241 = math.exp %240 : vector<8x128xf32>
    %cst_75 = arith.constant 1.000000e+00 : f32
    %242 = vector.broadcast %cst_75 : f32 to vector<8x128xf32>
    %243 = arith.addf %242, %241 : vector<8x128xf32>
    %244 = arith.divf %242, %243 : vector<8x128xf32>
    %245 = vector.extract_strided_slice %244 {offsets = [0, 0], sizes = [8, 32], strides = [1, 1]} : vector<8x128xf32> to vector<8x32xf32>
    %246 = vector.extract_strided_slice %244 {offsets = [0, 32], sizes = [8, 32], strides = [1, 1]} : vector<8x128xf32> to vector<8x32xf32>
    %247 = vector.extract_strided_slice %244 {offsets = [0, 96], sizes = [8, 32], strides = [1, 1]} : vector<8x128xf32> to vector<8x32xf32>
    %248 = vector.extract_strided_slice %239 {offsets = [0, 64], sizes = [8, 32], strides = [1, 1]} : vector<8x128xf32> to vector<8x32xf32>
    %249 = math.tanh %248 : vector<8x32xf32>
    %250 = arith.mulf %246, %234 : vector<8x32xf32>
    %251 = arith.mulf %245, %249 : vector<8x32xf32>
    %252 = arith.addf %250, %251 : vector<8x32xf32>
    %253 = math.tanh %252 : vector<8x32xf32>
    %254 = arith.mulf %247, %253 : vector<8x32xf32>
    %c40_76 = arith.constant 40 : index
    %c0_77 = arith.constant 0 : index
    %255 = vector.load %arg8[%c40_76, %c0_77] : memref<64x128xf32, #tpu.memory_space<vmem>>, vector<8x128xf32>
    %cst_78 = arith.constant dense<0.000000e+00> : vector<8x128xf32>
    %256 = tpu.matmul %254, %162, %cst_78 {dimension_numbers = #tpu.dot_dimension_numbers<[1], [0], [0], [1], [0, 0, 1, 1], [], []>} : vector<8x32xf32>, vector<32x128xf32>, vector<8x128xf32> -> vector<8x128xf32>
    %257 = arith.addf %255, %256 : vector<8x128xf32>
    %258 = arith.negf %257 : vector<8x128xf32>
    %259 = math.exp %258 : vector<8x128xf32>
    %cst_79 = arith.constant 1.000000e+00 : f32
    %260 = vector.broadcast %cst_79 : f32 to vector<8x128xf32>
    %261 = arith.addf %260, %259 : vector<8x128xf32>
    %262 = arith.divf %260, %261 : vector<8x128xf32>
    %263 = vector.extract_strided_slice %262 {offsets = [0, 0], sizes = [8, 32], strides = [1, 1]} : vector<8x128xf32> to vector<8x32xf32>
    %264 = vector.extract_strided_slice %262 {offsets = [0, 32], sizes = [8, 32], strides = [1, 1]} : vector<8x128xf32> to vector<8x32xf32>
    %265 = vector.extract_strided_slice %262 {offsets = [0, 96], sizes = [8, 32], strides = [1, 1]} : vector<8x128xf32> to vector<8x32xf32>
    %266 = vector.extract_strided_slice %257 {offsets = [0, 64], sizes = [8, 32], strides = [1, 1]} : vector<8x128xf32> to vector<8x32xf32>
    %267 = math.tanh %266 : vector<8x32xf32>
    %268 = arith.mulf %264, %252 : vector<8x32xf32>
    %269 = arith.mulf %263, %267 : vector<8x32xf32>
    %270 = arith.addf %268, %269 : vector<8x32xf32>
    %271 = math.tanh %270 : vector<8x32xf32>
    %272 = arith.mulf %265, %271 : vector<8x32xf32>
    %c48_80 = arith.constant 48 : index
    %c0_81 = arith.constant 0 : index
    %273 = vector.load %arg8[%c48_80, %c0_81] : memref<64x128xf32, #tpu.memory_space<vmem>>, vector<8x128xf32>
    %cst_82 = arith.constant dense<0.000000e+00> : vector<8x128xf32>
    %274 = tpu.matmul %272, %162, %cst_82 {dimension_numbers = #tpu.dot_dimension_numbers<[1], [0], [0], [1], [0, 0, 1, 1], [], []>} : vector<8x32xf32>, vector<32x128xf32>, vector<8x128xf32> -> vector<8x128xf32>
    %275 = arith.addf %273, %274 : vector<8x128xf32>
    %276 = arith.negf %275 : vector<8x128xf32>
    %277 = math.exp %276 : vector<8x128xf32>
    %cst_83 = arith.constant 1.000000e+00 : f32
    %278 = vector.broadcast %cst_83 : f32 to vector<8x128xf32>
    %279 = arith.addf %278, %277 : vector<8x128xf32>
    %280 = arith.divf %278, %279 : vector<8x128xf32>
    %281 = vector.extract_strided_slice %280 {offsets = [0, 0], sizes = [8, 32], strides = [1, 1]} : vector<8x128xf32> to vector<8x32xf32>
    %282 = vector.extract_strided_slice %280 {offsets = [0, 32], sizes = [8, 32], strides = [1, 1]} : vector<8x128xf32> to vector<8x32xf32>
    %283 = vector.extract_strided_slice %280 {offsets = [0, 96], sizes = [8, 32], strides = [1, 1]} : vector<8x128xf32> to vector<8x32xf32>
    %284 = vector.extract_strided_slice %275 {offsets = [0, 64], sizes = [8, 32], strides = [1, 1]} : vector<8x128xf32> to vector<8x32xf32>
    %285 = math.tanh %284 : vector<8x32xf32>
    %286 = arith.mulf %282, %270 : vector<8x32xf32>
    %287 = arith.mulf %281, %285 : vector<8x32xf32>
    %288 = arith.addf %286, %287 : vector<8x32xf32>
    %289 = math.tanh %288 : vector<8x32xf32>
    %290 = arith.mulf %283, %289 : vector<8x32xf32>
    %c56_84 = arith.constant 56 : index
    %c0_85 = arith.constant 0 : index
    %291 = vector.load %arg8[%c56_84, %c0_85] : memref<64x128xf32, #tpu.memory_space<vmem>>, vector<8x128xf32>
    %cst_86 = arith.constant dense<0.000000e+00> : vector<8x128xf32>
    %292 = tpu.matmul %290, %162, %cst_86 {dimension_numbers = #tpu.dot_dimension_numbers<[1], [0], [0], [1], [0, 0, 1, 1], [], []>} : vector<8x32xf32>, vector<32x128xf32>, vector<8x128xf32> -> vector<8x128xf32>
    %293 = arith.addf %291, %292 : vector<8x128xf32>
    %294 = arith.negf %293 : vector<8x128xf32>
    %295 = math.exp %294 : vector<8x128xf32>
    %cst_87 = arith.constant 1.000000e+00 : f32
    %296 = vector.broadcast %cst_87 : f32 to vector<8x128xf32>
    %297 = arith.addf %296, %295 : vector<8x128xf32>
    %298 = arith.divf %296, %297 : vector<8x128xf32>
    %299 = vector.extract_strided_slice %298 {offsets = [0, 0], sizes = [8, 32], strides = [1, 1]} : vector<8x128xf32> to vector<8x32xf32>
    %300 = vector.extract_strided_slice %298 {offsets = [0, 32], sizes = [8, 32], strides = [1, 1]} : vector<8x128xf32> to vector<8x32xf32>
    %301 = vector.extract_strided_slice %298 {offsets = [0, 96], sizes = [8, 32], strides = [1, 1]} : vector<8x128xf32> to vector<8x32xf32>
    %302 = vector.extract_strided_slice %293 {offsets = [0, 64], sizes = [8, 32], strides = [1, 1]} : vector<8x128xf32> to vector<8x32xf32>
    %303 = math.tanh %302 : vector<8x32xf32>
    %304 = arith.mulf %300, %288 : vector<8x32xf32>
    %305 = arith.mulf %299, %303 : vector<8x32xf32>
    %306 = arith.addf %304, %305 : vector<8x32xf32>
    %307 = math.tanh %306 : vector<8x32xf32>
    %308 = arith.mulf %301, %307 : vector<8x32xf32>
    %c0_88 = arith.constant 0 : index
    %c0_89 = arith.constant 0 : index
    %309 = vector.load %arg6[%c0_88, %c0_89] : memref<8x32xf32, #tpu.memory_space<vmem>>, vector<8x32xf32>
    tpu.vector_store %arg6[%c0_88, %c0_89], %308 {strides = array<i32>} : memref<8x32xf32, #tpu.memory_space<vmem>>, vector<8x32xf32>,
    return
  }
  func.func @transform_0(%arg0: i32) -> (i32, i32) {
    %c0_i32 = arith.constant 0 : i32
    %c0_i32_0 = arith.constant 0 : i32
    %c0_i32_1 = arith.constant 0 : i32
    return %c0_i32, %c0_i32_0 : i32, i32
  }
  func.func @transform_1(%arg0: i32) -> (i32, i32) {
    %c0_i32 = arith.constant 0 : i32
    %c0_i32_0 = arith.constant 0 : i32
    %c0_i32_1 = arith.constant 0 : i32
    return %c0_i32, %c0_i32_0 : i32, i32
  }
  func.func @transform_2(%arg0: i32) -> (i32, i32) {
    %c0_i32 = arith.constant 0 : i32
    %c0_i32_0 = arith.constant 0 : i32
    %c0_i32_1 = arith.constant 0 : i32
    return %c0_i32, %c0_i32_0 : i32, i32
  }
  func.func @transform_3(%arg0: i32) -> (i32, i32) {
    %c0_i32 = arith.constant 0 : i32
    %c0_i32_0 = arith.constant 0 : i32
    %c0_i32_1 = arith.constant 0 : i32
    return %c0_i32, %c0_i32_0 : i32, i32
  }
  func.func @transform_4(%arg0: i32) -> (i32, i32) {
    %c0_i32 = arith.constant 0 : i32
    %c0_i32_0 = arith.constant 0 : i32
    %c0_i32_1 = arith.constant 0 : i32
    return %c0_i32, %c0_i32_0 : i32, i32
  }
  func.func @transform_5(%arg0: i32) -> (i32, i32) {
    %c0_i32 = arith.constant 0 : i32
    %c0_i32_0 = arith.constant 0 : i32
    %c0_i32_1 = arith.constant 0 : i32
    return %c0_i32, %c0_i32_0 : i32, i32
  }
}

</mosaic_0001>

<llo_original>
// kernel: linear_lstm_forward.1
$region0: #{linear_lstm_forward.1}
  #allocation0 [shape = 'u32[]', space=smem, size = 0x4, offset = 0x4, fixed_abs, tag = 'smem constant byte address 0x4 - core index']
  #allocation1 [shape = 'u32[144,128]{1,0:T(1,128)}', space=vmem, size = 0x12000, scoped, tag = 'internal scratch']
  #allocation2 [shape = 'f32[64,32]{1,0:T(8,128)}', space=vmem, size = 0x8000, scoped, tag = 'scratch operand']
  #allocation3 [shape = 'f32[64,128]{1,0:T(8,128)}', space=vmem, size = 0x8000, scoped, tag = 'scratch operand']
  %s0 = inlined_call_operand.vmem [shape: f32[64,128], index: 0, kind: input, shape index: {}]
  %s1 = inlined_call_operand.vmem [shape: f32[32,128], index: 1, kind: input, shape index: {}]
  %s2 = inlined_call_operand.vmem [shape: f32[32,128], index: 2, kind: input, shape index: {}]
  %s3 = inlined_call_operand.vmem [shape: f32[1,128], index: 3, kind: input, shape index: {}]
  %s4 = inlined_call_operand.vmem [shape: f32[32,128], index: 4, kind: input, shape index: {}]
  %s5 = inlined_call_operand.vmem [shape: f32[8,32], index: 5, kind: output, shape index: {}]
  %s6 = sld [smem:[#allocation0]]
  $region30: #{linear_lstm_forward.1} parent=0
    _
  %s8 = ssub.s32 1, %s6
  %s9 = scalar_select 0, %s8, %s6
  // Predicated region
  $region2: #{linear_lstm_forward.1} parent=0 // pred_check
    _
  $region3: #{linear_lstm_forward.1} parent=0 // pred_check_branch
    %11 = sbr.rel (0) target = $region5
  $region4: #{linear_lstm_forward.1} parent=0 // pred_region
    _
  $region5: #{linear_lstm_forward.1} parent=0 // pred_fallthru
    _
  // Predicated region
  $region6: #{linear_lstm_forward.1} parent=0 // pred_check
    _
  $region7: #{linear_lstm_forward.1} parent=0 // pred_check_branch
    %13 = sbr.rel (0) target = $region9
  $region8: #{linear_lstm_forward.1} parent=0 // pred_region
    _
  $region9: #{linear_lstm_forward.1} parent=0 // pred_fallthru
    _
  // Predicated region
  $region10: #{linear_lstm_forward.1} parent=0 // pred_check
    _
  $region11: #{linear_lstm_forward.1} parent=0 // pred_check_branch
    %15 = sbr.rel (0) target = $region13
  $region12: #{linear_lstm_forward.1} parent=0 // pred_region
    _
  $region13: #{linear_lstm_forward.1} parent=0 // pred_fallthru
    _
  // Predicated region
  $region14: #{linear_lstm_forward.1} parent=0 // pred_check
    _
  $region15: #{linear_lstm_forward.1} parent=0 // pred_check_branch
    %17 = sbr.rel (0) target = $region17
  $region16: #{linear_lstm_forward.1} parent=0 // pred_region
    _
  $region17: #{linear_lstm_forward.1} parent=0 // pred_fallthru
    _
  // Predicated region
  $region18: #{linear_lstm_forward.1} parent=0 // pred_check
    _
  $region19: #{linear_lstm_forward.1} parent=0 // pred_check_branch
    %19 = sbr.rel (0) target = $region21
  $region20: #{linear_lstm_forward.1} parent=0 // pred_region
    _
  $region21: #{linear_lstm_forward.1} parent=0 // pred_fallthru
    _
  %v20 = vld [vmem:[%s1] sm:$0xff]
  %v21 = vld [vmem:[%s1 + $0x8] sm:$0xff]
  %v22 = vld [vmem:[%s1 + $0x10] sm:$0xff]
  %v23 = vld [vmem:[%s1 + $0x18] sm:$0xff]
  %v24 = vld [vmem:[%s0] sm:$0xff]
  %vm25 = vcmask 261120
  %v27 = vsel %vm25, 0.0, 0
  %29 = vmatprep.subr.mxu0 0.0
  %30 = vmatpush1.msra.mxu0 %v20
  %31 = vmatprep.subr.mxu0 0.0
  %32 = vmatpush1.msra.mxu0 %v21
  %33 = vmatprep.subr.mxu0 0.0
  %34 = vmatpush1.msra.mxu0 %v22
  %35 = vmatprep.subr.mxu0 0.0
  %36 = vmatpush1.msra.mxu0 %v23
  %37 = vmatprep.subr.mxu0 0.0
  %38 = vmatpush1.msra.mxu0 0.0
  %39 = vmatprep.subr.mxu0 0.0
  %40 = vmatpush1.msra.mxu0 0.0
  %41 = vmatprep.subr.mxu0 0.0
  %42 = vmatpush1.msra.mxu0 0.0
  %43 = vmatprep.subr.mxu0 0.0
  %44 = vmatpush1.msra.mxu0 0.0
  %45 = vmatprep.subr.mxu0 0.0
  %46 = vmatpush1.msra.mxu0 0.0
  %47 = vmatprep.subr.mxu0 0.0
  %48 = vmatpush1.msra.mxu0 0.0
  %49 = vmatprep.subr.mxu0 0.0
  %50 = vmatpush1.msra.mxu0 0.0
  %51 = vmatprep.subr.mxu0 0.0
  %52 = vmatpush1.msra.mxu0 0.0
  %53 = vmatprep.subr.mxu0 0.0
  %54 = vmatpush1.msra.mxu0 0.0
  %55 = vmatprep.subr.mxu0 0.0
  %56 = vmatpush1.msra.mxu0 0.0
  %57 = vmatprep.subr.mxu0 0.0
  %58 = vmatpush1.msra.mxu0 0.0
  %59 = vmatprep.subr.mxu0 0.0
  %60 = vmatpush1.msra.mxu0 0.0
  %61 = vmatprep.subr.mxu0 0.0
  %62 = vmatpush1.msra.mxu0 0.0
  %63 = vmatprep.subr.mxu0 0.0
  %64 = vmatpush1.msra.mxu0 0.0
  %65 = vmatprep.subr.mxu0 0.0
  %66 = vmatpush1.msra.mxu0 0.0
  %67 = vmatprep.subr.mxu0 0.0
  %68 = vmatpush1.msra.mxu0 0.0
  %69 = vmatprep.subr.mxu0 0.0
  %70 = vmatpush1.msra.mxu0 0.0
  %71 = vmatprep.subr.mxu0 0.0
  %72 = vmatpush1.msra.mxu0 0.0
  %73 = vmatprep.subr.mxu0 0.0
  %74 = vmatpush1.msra.mxu0 0.0
  %75 = vmatprep.subr.mxu0 0.0
  %76 = vmatpush1.msra.mxu0 0.0
  %77 = vmatprep.subr.mxu0 0.0
  %78 = vmatpush1.msra.mxu0 0.0
  %79 = vmatprep.subr.mxu0 0.0
  %80 = vmatpush1.msra.mxu0 0.0
  %81 = vmatprep.subr.mxu0 0.0
  %82 = vmatpush1.msra.mxu0 0.0
  %83 = vmatprep.subr.mxu0 0.0
  %84 = vmatpush1.msra.mxu0 0.0
  %85 = vmatprep.subr.mxu0 0.0
  %86 = vmatpush1.msra.mxu0 0.0
  %87 = vmatprep.subr.mxu0 0.0
  %88 = vmatpush1.msra.mxu0 0.0
  %89 = vmatprep.subr.mxu0 0.0
  %90 = vmatpush1.msra.mxu0 0.0
  %91 = vmatprep.subr.mxu0 0.0
  %92 = vmatpush1.msra.mxu0 0.0
  %93 = vmatprep.mubr.f32.mxu0 0.0
  %94 = vmatmul.mubr.f32.gmra.mrb[0].mxu0 %v27
  %v95 = vpop.f32.mrb[0].mxu0
  %v96 = vadd.f32 0.0, %v95
  %v97 = vpop.f32.mrb[0].mxu0
  %98 = vdwg.mxu0
  %v99 = vadd.f32 %v24, %v96
  %v100 = vxor.u32 %v99, 2147483648
  %v101 = vmul.f32 %v100, 1.442695
  %v102 = vpow.pop %v101
  %v103 = vadd.f32 %v102, 1.0
  %v104 = vrcp.pop %v103
  %v105 = vmul.f32 1.0, %v104
  %v106 = vtanh.pop %v99
  %v107 = vmul.f32 %v105, 0.0
  %109 = vrot.lane.b32.xlu0 %v106, 64
  %v110 = vpop.permute.xlu0 %109
  %v112 = vmul.f32 %v105, %v110
  %114 = vrot.lane.b32.xlu0 %v112, 32
  %v115 = vpop.permute.xlu0 %114
  %v117 = vadd.f32 %v107, %v115
  %v118 = vtanh.pop %v117
  %120 = vrot.lane.b32.xlu0 %v118, 64
  %v121 = vpop.permute.xlu0 %120
  %v123 = vmul.f32 %v105, %v121
  %125 = vrot.lane.b32.xlu0 %v123, 32
  %v126 = vpop.permute.xlu0 %125
  %128 = vst.msk [vmem:[#allocation2] sm:$0xff] %vm25, %v126
  %v129 = vld [vmem:[%s0 + $0x8] sm:$0xff]
  %v130 = vsel %vm25, %v126, 0
  %132 = vmatprep.subr.mxu0 0.0
  %133 = vmatpush1.msra.mxu0 %v20
  %134 = vmatprep.subr.mxu0 0.0
  %135 = vmatpush1.msra.mxu0 %v21
  %136 = vmatprep.subr.mxu0 0.0
  %137 = vmatpush1.msra.mxu0 %v22
  %138 = vmatprep.subr.mxu0 0.0
  %139 = vmatpush1.msra.mxu0 %v23
  %140 = vmatprep.subr.mxu0 0.0
  %141 = vmatpush1.msra.mxu0 0.0
  %142 = vmatprep.subr.mxu0 0.0
  %143 = vmatpush1.msra.mxu0 0.0
  %144 = vmatprep.subr.mxu0 0.0
  %145 = vmatpush1.msra.mxu0 0.0
  %146 = vmatprep.subr.mxu0 0.0
  %147 = vmatpush1.msra.mxu0 0.0
  %148 = vmatprep.subr.mxu0 0.0
  %149 = vmatpush1.msra.mxu0 0.0
  %150 = vmatprep.subr.mxu0 0.0
  %151 = vmatpush1.msra.mxu0 0.0
  %152 = vmatprep.subr.mxu0 0.0
  %153 = vmatpush1.msra.mxu0 0.0
  %154 = vmatprep.subr.mxu0 0.0
  %155 = vmatpush1.msra.mxu0 0.0
  %156 = vmatprep.subr.mxu0 0.0
  %157 = vmatpush1.msra.mxu0 0.0
  %158 = vmatprep.subr.mxu0 0.0
  %159 = vmatpush1.msra.mxu0 0.0
  %160 = vmatprep.subr.mxu0 0.0
  %161 = vmatpush1.msra.mxu0 0.0
  %162 = vmatprep.subr.mxu0 0.0
  %163 = vmatpush1.msra.mxu0 0.0
  %164 = vmatprep.subr.mxu0 0.0
  %165 = vmatpush1.msra.mxu0 0.0
  %166 = vmatprep.subr.mxu0 0.0
  %167 = vmatpush1.msra.mxu0 0.0
  %168 = vmatprep.subr.mxu0 0.0
  %169 = vmatpush1.msra.mxu0 0.0
  %170 = vmatprep.subr.mxu0 0.0
  %171 = vmatpush1.msra.mxu0 0.0
  %172 = vmatprep.subr.mxu0 0.0
  %173 = vmatpush1.msra.mxu0 0.0
  %174 = vmatprep.subr.mxu0 0.0
  %175 = vmatpush1.msra.mxu0 0.0
  %176 = vmatprep.subr.mxu0 0.0
  %177 = vmatpush1.msra.mxu0 0.0
  %178 = vmatprep.subr.mxu0 0.0
  %179 = vmatpush1.msra.mxu0 0.0
  %180 = vmatprep.subr.mxu0 0.0
  %181 = vmatpush1.msra.mxu0 0.0
  %182 = vmatprep.subr.mxu0 0.0
  %183 = vmatpush1.msra.mxu0 0.0
  %184 = vmatprep.subr.mxu0 0.0
  %185 = vmatpush1.msra.mxu0 0.0
  %186 = vmatprep.subr.mxu0 0.0
  %187 = vmatpush1.msra.mxu0 0.0
  %188 = vmatprep.subr.mxu0 0.0
  %189 = vmatpush1.msra.mxu0 0.0
  %190 = vmatprep.subr.mxu0 0.0
  %191 = vmatpush1.msra.mxu0 0.0
  %192 = vmatprep.subr.mxu0 0.0
  %193 = vmatpush1.msra.mxu0 0.0
  %194 = vmatprep.subr.mxu0 0.0
  %195 = vmatpush1.msra.mxu0 0.0
  %196 = vmatprep.mubr.f32.mxu0 0.0
  %197 = vmatmul.mubr.f32.gmra.mrb[0].mxu0 %v130
  %v198 = vpop.f32.mrb[0].mxu0
  %v199 = vadd.f32 0.0, %v198
  %v200 = vpop.f32.mrb[0].mxu0
  %201 = vdwg.mxu0
  %v202 = vadd.f32 %v129, %v199
  %v203 = vxor.u32 %v202, 2147483648
  %v204 = vmul.f32 %v203, 1.442695
  %v205 = vpow.pop %v204
  %v206 = vadd.f32 %v205, 1.0
  %v207 = vrcp.pop %v206
  %v208 = vmul.f32 1.0, %v207
  %v209 = vtanh.pop %v202
  %v210 = vmul.f32 %v208, %v117
  %212 = vrot.lane.b32.xlu0 %v209, 64
  %v213 = vpop.permute.xlu0 %212
  %v215 = vmul.f32 %v208, %v213
  %217 = vrot.lane.b32.xlu0 %v215, 32
  %v218 = vpop.permute.xlu0 %217
  %v220 = vadd.f32 %v210, %v218
  %v221 = vtanh.pop %v220
  %223 = vrot.lane.b32.xlu0 %v221, 64
  %v224 = vpop.permute.xlu0 %223
  %v226 = vmul.f32 %v208, %v224
  %228 = vrot.lane.b32.xlu0 %v226, 32
  %v229 = vpop.permute.xlu0 %228
  %231 = vst.msk [vmem:[#allocation2 + $0x8] sm:$0xff] %vm25, %v229
  %v232 = vld [vmem:[%s0 + $0x10] sm:$0xff]
  %v233 = vsel %vm25, %v229, 0
  %235 = vmatprep.subr.mxu0 0.0
  %236 = vmatpush1.msra.mxu0 %v20
  %237 = vmatprep.subr.mxu0 0.0
  %238 = vmatpush1.msra.mxu0 %v21
  %239 = vmatprep.subr.mxu0 0.0
  %240 = vmatpush1.msra.mxu0 %v22
  %241 = vmatprep.subr.mxu0 0.0
  %242 = vmatpush1.msra.mxu0 %v23
  %243 = vmatprep.subr.mxu0 0.0
  %244 = vmatpush1.msra.mxu0 0.0
  %245 = vmatprep.subr.mxu0 0.0
  %246 = vmatpush1.msra.mxu0 0.0
  %247 = vmatprep.subr.mxu0 0.0
  %248 = vmatpush1.msra.mxu0 0.0
  %249 = vmatprep.subr.mxu0 0.0
  %250 = vmatpush1.msra.mxu0 0.0
  %251 = vmatprep.subr.mxu0 0.0
  %252 = vmatpush1.msra.mxu0 0.0
  %253 = vmatprep.subr.mxu0 0.0
  %254 = vmatpush1.msra.mxu0 0.0
  %255 = vmatprep.subr.mxu0 0.0
  %256 = vmatpush1.msra.mxu0 0.0
  %257 = vmatprep.subr.mxu0 0.0
  %258 = vmatpush1.msra.mxu0 0.0
  %259 = vmatprep.subr.mxu0 0.0
  %260 = vmatpush1.msra.mxu0 0.0
  %261 = vmatprep.subr.mxu0 0.0
  %262 = vmatpush1.msra.mxu0 0.0
  %263 = vmatprep.subr.mxu0 0.0
  %264 = vmatpush1.msra.mxu0 0.0
  %265 = vmatprep.subr.mxu0 0.0
  %266 = vmatpush1.msra.mxu0 0.0
  %267 = vmatprep.subr.mxu0 0.0
  %268 = vmatpush1.msra.mxu0 0.0
  %269 = vmatprep.subr.mxu0 0.0
  %270 = vmatpush1.msra.mxu0 0.0
  %271 = vmatprep.subr.mxu0 0.0
  %272 = vmatpush1.msra.mxu0 0.0
  %273 = vmatprep.subr.mxu0 0.0
  %274 = vmatpush1.msra.mxu0 0.0
  %275 = vmatprep.subr.mxu0 0.0
  %276 = vmatpush1.msra.mxu0 0.0
  %277 = vmatprep.subr.mxu0 0.0
  %278 = vmatpush1.msra.mxu0 0.0
  %279 = vmatprep.subr.mxu0 0.0
  %280 = vmatpush1.msra.mxu0 0.0
  %281 = vmatprep.subr.mxu0 0.0
  %282 = vmatpush1.msra.mxu0 0.0
  %283 = vmatprep.subr.mxu0 0.0
  %284 = vmatpush1.msra.mxu0 0.0
  %285 = vmatprep.subr.mxu0 0.0
  %286 = vmatpush1.msra.mxu0 0.0
  %287 = vmatprep.subr.mxu0 0.0
  %288 = vmatpush1.msra.mxu0 0.0
  %289 = vmatprep.subr.mxu0 0.0
  %290 = vmatpush1.msra.mxu0 0.0
  %291 = vmatprep.subr.mxu0 0.0
  %292 = vmatpush1.msra.mxu0 0.0
  %293 = vmatprep.subr.mxu0 0.0
  %294 = vmatpush1.msra.mxu0 0.0
  %295 = vmatprep.subr.mxu0 0.0
  %296 = vmatpush1.msra.mxu0 0.0
  %297 = vmatprep.subr.mxu0 0.0
  %298 = vmatpush1.msra.mxu0 0.0
  %299 = vmatprep.mubr.f32.mxu0 0.0
  %300 = vmatmul.mubr.f32.gmra.mrb[0].mxu0 %v233
  %v301 = vpop.f32.mrb[0].mxu0
  %v302 = vadd.f32 0.0, %v301
  %v303 = vpop.f32.mrb[0].mxu0
  %304 = vdwg.mxu0
  %v305 = vadd.f32 %v232, %v302
  %v306 = vxor.u32 %v305, 2147483648
  %v307 = vmul.f32 %v306, 1.442695
  %v308 = vpow.pop %v307
  %v309 = vadd.f32 %v308, 1.0
  %v310 = vrcp.pop %v309
  %v311 = vmul.f32 1.0, %v310
  %v312 = vtanh.pop %v305
  %v313 = vmul.f32 %v311, %v220
  %315 = vrot.lane.b32.xlu0 %v312, 64
  %v316 = vpop.permute.xlu0 %315
  %v318 = vmul.f32 %v311, %v316
  %320 = vrot.lane.b32.xlu0 %v318, 32
  %v321 = vpop.permute.xlu0 %320
  %v323 = vadd.f32 %v313, %v321
  %v324 = vtanh.pop %v323
  %326 = vrot.lane.b32.xlu0 %v324, 64
  %v327 = vpop.permute.xlu0 %326
  %v329 = vmul.f32 %v311, %v327
  %331 = vrot.lane.b32.xlu0 %v329, 32
  %v332 = vpop.permute.xlu0 %331
  %334 = vst.msk [vmem:[#allocation2 + $0x10] sm:$0xff] %vm25, %v332
  %v335 = vld [vmem:[%s0 + $0x18] sm:$0xff]
  %v336 = vsel %vm25, %v332, 0
  %338 = vmatprep.subr.mxu0 0.0
  %339 = vmatpush1.msra.mxu0 %v20
  %340 = vmatprep.subr.mxu0 0.0
  %341 = vmatpush1.msra.mxu0 %v21
  %342 = vmatprep.subr.mxu0 0.0
  %343 = vmatpush1.msra.mxu0 %v22
  %344 = vmatprep.subr.mxu0 0.0
  %345 = vmatpush1.msra.mxu0 %v23
  %346 = vmatprep.subr.mxu0 0.0
  %347 = vmatpush1.msra.mxu0 0.0
  %348 = vmatprep.subr.mxu0 0.0
  %349 = vmatpush1.msra.mxu0 0.0
  %350 = vmatprep.subr.mxu0 0.0
  %351 = vmatpush1.msra.mxu0 0.0
  %352 = vmatprep.subr.mxu0 0.0
  %353 = vmatpush1.msra.mxu0 0.0
  %354 = vmatprep.subr.mxu0 0.0
  %355 = vmatpush1.msra.mxu0 0.0
  %356 = vmatprep.subr.mxu0 0.0
  %357 = vmatpush1.msra.mxu0 0.0
  %358 = vmatprep.subr.mxu0 0.0
  %359 = vmatpush1.msra.mxu0 0.0
  %360 = vmatprep.subr.mxu0 0.0
  %361 = vmatpush1.msra.mxu0 0.0
  %362 = vmatprep.subr.mxu0 0.0
  %363 = vmatpush1.msra.mxu0 0.0
  %364 = vmatprep.subr.mxu0 0.0
  %365 = vmatpush1.msra.mxu0 0.0
  %366 = vmatprep.subr.mxu0 0.0
  %367 = vmatpush1.msra.mxu0 0.0
  %368 = vmatprep.subr.mxu0 0.0
  %369 = vmatpush1.msra.mxu0 0.0
  %370 = vmatprep.subr.mxu0 0.0
  %371 = vmatpush1.msra.mxu0 0.0
  %372 = vmatprep.subr.mxu0 0.0
  %373 = vmatpush1.msra.mxu0 0.0
  %374 = vmatprep.subr.mxu0 0.0
  %375 = vmatpush1.msra.mxu0 0.0
  %376 = vmatprep.subr.mxu0 0.0
  %377 = vmatpush1.msra.mxu0 0.0
  %378 = vmatprep.subr.mxu0 0.0
  %379 = vmatpush1.msra.mxu0 0.0
  %380 = vmatprep.subr.mxu0 0.0
  %381 = vmatpush1.msra.mxu0 0.0
  %382 = vmatprep.subr.mxu0 0.0
  %383 = vmatpush1.msra.mxu0 0.0
  %384 = vmatprep.subr.mxu0 0.0
  %385 = vmatpush1.msra.mxu0 0.0
  %386 = vmatprep.subr.mxu0 0.0
  %387 = vmatpush1.msra.mxu0 0.0
  %388 = vmatprep.subr.mxu0 0.0
  %389 = vmatpush1.msra.mxu0 0.0
  %390 = vmatprep.subr.mxu0 0.0
  %391 = vmatpush1.msra.mxu0 0.0
  %392 = vmatprep.subr.mxu0 0.0
  %393 = vmatpush1.msra.mxu0 0.0
  %394 = vmatprep.subr.mxu0 0.0
  %395 = vmatpush1.msra.mxu0 0.0
  %396 = vmatprep.subr.mxu0 0.0
  %397 = vmatpush1.msra.mxu0 0.0
  %398 = vmatprep.subr.mxu0 0.0
  %399 = vmatpush1.msra.mxu0 0.0
  %400 = vmatprep.subr.mxu0 0.0
  %401 = vmatpush1.msra.mxu0 0.0
  %402 = vmatprep.mubr.f32.mxu0 0.0
  %403 = vmatmul.mubr.f32.gmra.mrb[0].mxu0 %v336
  %v404 = vpop.f32.mrb[0].mxu0
  %v405 = vadd.f32 0.0, %v404
  %v406 = vpop.f32.mrb[0].mxu0
  %407 = vdwg.mxu0
  %v408 = vadd.f32 %v335, %v405
  %v409 = vxor.u32 %v408, 2147483648
  %v410 = vmul.f32 %v409, 1.442695
  %v411 = vpow.pop %v410
  %v412 = vadd.f32 %v411, 1.0
  %v413 = vrcp.pop %v412
  %v414 = vmul.f32 1.0, %v413
  %v415 = vtanh.pop %v408
  %v416 = vmul.f32 %v414, %v323
  %418 = vrot.lane.b32.xlu0 %v415, 64
  %v419 = vpop.permute.xlu0 %418
  %v421 = vmul.f32 %v414, %v419
  %423 = vrot.lane.b32.xlu0 %v421, 32
  %v424 = vpop.permute.xlu0 %423
  %v426 = vadd.f32 %v416, %v424
  %v427 = vtanh.pop %v426
  %429 = vrot.lane.b32.xlu0 %v427, 64
  %v430 = vpop.permute.xlu0 %429
  %v432 = vmul.f32 %v414, %v430
  %434 = vrot.lane.b32.xlu0 %v432, 32
  %v435 = vpop.permute.xlu0 %434
  %437 = vst.msk [vmem:[#allocation2 + $0x18] sm:$0xff] %vm25, %v435
  %v438 = vld [vmem:[%s0 + $0x20] sm:$0xff]
  %v439 = vsel %vm25, %v435, 0
  %441 = vmatprep.subr.mxu0 0.0
  %442 = vmatpush1.msra.mxu0 %v20
  %443 = vmatprep.subr.mxu0 0.0
  %444 = vmatpush1.msra.mxu0 %v21
  %445 = vmatprep.subr.mxu0 0.0
  %446 = vmatpush1.msra.mxu0 %v22
  %447 = vmatprep.subr.mxu0 0.0
  %448 = vmatpush1.msra.mxu0 %v23
  %449 = vmatprep.subr.mxu0 0.0
  %450 = vmatpush1.msra.mxu0 0.0
  %451 = vmatprep.subr.mxu0 0.0
  %452 = vmatpush1.msra.mxu0 0.0
  %453 = vmatprep.subr.mxu0 0.0
  %454 = vmatpush1.msra.mxu0 0.0
  %455 = vmatprep.subr.mxu0 0.0
  %456 = vmatpush1.msra.mxu0 0.0
  %457 = vmatprep.subr.mxu0 0.0
  %458 = vmatpush1.msra.mxu0 0.0
  %459 = vmatprep.subr.mxu0 0.0
  %460 = vmatpush1.msra.mxu0 0.0
  %461 = vmatprep.subr.mxu0 0.0
  %462 = vmatpush1.msra.mxu0 0.0
  %463 = vmatprep.subr.mxu0 0.0
  %464 = vmatpush1.msra.mxu0 0.0
  %465 = vmatprep.subr.mxu0 0.0
  %466 = vmatpush1.msra.mxu0 0.0
  %467 = vmatprep.subr.mxu0 0.0
  %468 = vmatpush1.msra.mxu0 0.0
  %469 = vmatprep.subr.mxu0 0.0
  %470 = vmatpush1.msra.mxu0 0.0
  %471 = vmatprep.subr.mxu0 0.0
  %472 = vmatpush1.msra.mxu0 0.0
  %473 = vmatprep.subr.mxu0 0.0
  %474 = vmatpush1.msra.mxu0 0.0
  %475 = vmatprep.subr.mxu0 0.0
  %476 = vmatpush1.msra.mxu0 0.0
  %477 = vmatprep.subr.mxu0 0.0
  %478 = vmatpush1.msra.mxu0 0.0
  %479 = vmatprep.subr.mxu0 0.0
  %480 = vmatpush1.msra.mxu0 0.0
  %481 = vmatprep.subr.mxu0 0.0
  %482 = vmatpush1.msra.mxu0 0.0
  %483 = vmatprep.subr.mxu0 0.0
  %484 = vmatpush1.msra.mxu0 0.0
  %485 = vmatprep.subr.mxu0 0.0
  %486 = vmatpush1.msra.mxu0 0.0
  %487 = vmatprep.subr.mxu0 0.0
  %488 = vmatpush1.msra.mxu0 0.0
  %489 = vmatprep.subr.mxu0 0.0
  %490 = vmatpush1.msra.mxu0 0.0
  %491 = vmatprep.subr.mxu0 0.0
  %492 = vmatpush1.msra.mxu0 0.0
  %493 = vmatprep.subr.mxu0 0.0
  %494 = vmatpush1.msra.mxu0 0.0
  %495 = vmatprep.subr.mxu0 0.0
  %496 = vmatpush1.msra.mxu0 0.0
  %497 = vmatprep.subr.mxu0 0.0
  %498 = vmatpush1.msra.mxu0 0.0
  %499 = vmatprep.subr.mxu0 0.0
  %500 = vmatpush1.msra.mxu0 0.0
  %501 = vmatprep.subr.mxu0 0.0
  %502 = vmatpush1.msra.mxu0 0.0
  %503 = vmatprep.subr.mxu0 0.0
  %504 = vmatpush1.msra.mxu0 0.0
  %505 = vmatprep.mubr.f32.mxu0 0.0
  %506 = vmatmul.mubr.f32.gmra.mrb[0].mxu0 %v439
  %v507 = vpop.f32.mrb[0].mxu0
  %v508 = vadd.f32 0.0, %v507
  %v509 = vpop.f32.mrb[0].mxu0
  %510 = vdwg.mxu0
  %v511 = vadd.f32 %v438, %v508
  %v512 = vxor.u32 %v511, 2147483648
  %v513 = vmul.f32 %v512, 1.442695
  %v514 = vpow.pop %v513
  %v515 = vadd.f32 %v514, 1.0
  %v516 = vrcp.pop %v515
  %v517 = vmul.f32 1.0, %v516
  %v518 = vtanh.pop %v511
  %v519 = vmul.f32 %v517, %v426
  %521 = vrot.lane.b32.xlu0 %v518, 64
  %v522 = vpop.permute.xlu0 %521
  %v524 = vmul.f32 %v517, %v522
  %526 = vrot.lane.b32.xlu0 %v524, 32
  %v527 = vpop.permute.xlu0 %526
  %v529 = vadd.f32 %v519, %v527
  %v530 = vtanh.pop %v529
  %532 = vrot.lane.b32.xlu0 %v530, 64
  %v533 = vpop.permute.xlu0 %532
  %v535 = vmul.f32 %v517, %v533
  %537 = vrot.lane.b32.xlu0 %v535, 32
  %v538 = vpop.permute.xlu0 %537
  %540 = vst.msk [vmem:[#allocation2 + $0x20] sm:$0xff] %vm25, %v538
  %v541 = vld [vmem:[%s0 + $0x28] sm:$0xff]
  %v542 = vsel %vm25, %v538, 0
  %544 = vmatprep.subr.mxu0 0.0
  %545 = vmatpush1.msra.mxu0 %v20
  %546 = vmatprep.subr.mxu0 0.0
  %547 = vmatpush1.msra.mxu0 %v21
  %548 = vmatprep.subr.mxu0 0.0
  %549 = vmatpush1.msra.mxu0 %v22
  %550 = vmatprep.subr.mxu0 0.0
  %551 = vmatpush1.msra.mxu0 %v23
  %552 = vmatprep.subr.mxu0 0.0
  %553 = vmatpush1.msra.mxu0 0.0
  %554 = vmatprep.subr.mxu0 0.0
  %555 = vmatpush1.msra.mxu0 0.0
  %556 = vmatprep.subr.mxu0 0.0
  %557 = vmatpush1.msra.mxu0 0.0
  %558 = vmatprep.subr.mxu0 0.0
  %559 = vmatpush1.msra.mxu0 0.0
  %560 = vmatprep.subr.mxu0 0.0
  %561 = vmatpush1.msra.mxu0 0.0
  %562 = vmatprep.subr.mxu0 0.0
  %563 = vmatpush1.msra.mxu0 0.0
  %564 = vmatprep.subr.mxu0 0.0
  %565 = vmatpush1.msra.mxu0 0.0
  %566 = vmatprep.subr.mxu0 0.0
  %567 = vmatpush1.msra.mxu0 0.0
  %568 = vmatprep.subr.mxu0 0.0
  %569 = vmatpush1.msra.mxu0 0.0
  %570 = vmatprep.subr.mxu0 0.0
  %571 = vmatpush1.msra.mxu0 0.0
  %572 = vmatprep.subr.mxu0 0.0
  %573 = vmatpush1.msra.mxu0 0.0
  %574 = vmatprep.subr.mxu0 0.0
  %575 = vmatpush1.msra.mxu0 0.0
  %576 = vmatprep.subr.mxu0 0.0
  %577 = vmatpush1.msra.mxu0 0.0
  %578 = vmatprep.subr.mxu0 0.0
  %579 = vmatpush1.msra.mxu0 0.0
  %580 = vmatprep.subr.mxu0 0.0
  %581 = vmatpush1.msra.mxu0 0.0
  %582 = vmatprep.subr.mxu0 0.0
  %583 = vmatpush1.msra.mxu0 0.0
  %584 = vmatprep.subr.mxu0 0.0
  %585 = vmatpush1.msra.mxu0 0.0
  %586 = vmatprep.subr.mxu0 0.0
  %587 = vmatpush1.msra.mxu0 0.0
  %588 = vmatprep.subr.mxu0 0.0
  %589 = vmatpush1.msra.mxu0 0.0
  %590 = vmatprep.subr.mxu0 0.0
  %591 = vmatpush1.msra.mxu0 0.0
  %592 = vmatprep.subr.mxu0 0.0
  %593 = vmatpush1.msra.mxu0 0.0
  %594 = vmatprep.subr.mxu0 0.0
  %595 = vmatpush1.msra.mxu0 0.0
  %596 = vmatprep.subr.mxu0 0.0
  %597 = vmatpush1.msra.mxu0 0.0
  %598 = vmatprep.subr.mxu0 0.0
  %599 = vmatpush1.msra.mxu0 0.0
  %600 = vmatprep.subr.mxu0 0.0
  %601 = vmatpush1.msra.mxu0 0.0
  %602 = vmatprep.subr.mxu0 0.0
  %603 = vmatpush1.msra.mxu0 0.0
  %604 = vmatprep.subr.mxu0 0.0
  %605 = vmatpush1.msra.mxu0 0.0
  %606 = vmatprep.subr.mxu0 0.0
  %607 = vmatpush1.msra.mxu0 0.0
  %608 = vmatprep.mubr.f32.mxu0 0.0
  %609 = vmatmul.mubr.f32.gmra.mrb[0].mxu0 %v542
  %v610 = vpop.f32.mrb[0].mxu0
  %v611 = vadd.f32 0.0, %v610
  %v612 = vpop.f32.mrb[0].mxu0
  %613 = vdwg.mxu0
  %v614 = vadd.f32 %v541, %v611
  %v615 = vxor.u32 %v614, 2147483648
  %v616 = vmul.f32 %v615, 1.442695
  %v617 = vpow.pop %v616
  %v618 = vadd.f32 %v617, 1.0
  %v619 = vrcp.pop %v618
  %v620 = vmul.f32 1.0, %v619
  %v621 = vtanh.pop %v614
  %v622 = vmul.f32 %v620, %v529
  %624 = vrot.lane.b32.xlu0 %v621, 64
  %v625 = vpop.permute.xlu0 %624
  %v627 = vmul.f32 %v620, %v625
  %629 = vrot.lane.b32.xlu0 %v627, 32
  %v630 = vpop.permute.xlu0 %629
  %v632 = vadd.f32 %v622, %v630
  %v633 = vtanh.pop %v632
  %635 = vrot.lane.b32.xlu0 %v633, 64
  %v636 = vpop.permute.xlu0 %635
  %v638 = vmul.f32 %v620, %v636
  %640 = vrot.lane.b32.xlu0 %v638, 32
  %v641 = vpop.permute.xlu0 %640
  %643 = vst.msk [vmem:[#allocation2 + $0x28] sm:$0xff] %vm25, %v641
  %v644 = vld [vmem:[%s0 + $0x30] sm:$0xff]
  %v645 = vsel %vm25, %v641, 0
  %647 = vmatprep.subr.mxu0 0.0
  %648 = vmatpush1.msra.mxu0 %v20
  %649 = vmatprep.subr.mxu0 0.0
  %650 = vmatpush1.msra.mxu0 %v21
  %651 = vmatprep.subr.mxu0 0.0
  %652 = vmatpush1.msra.mxu0 %v22
  %653 = vmatprep.subr.mxu0 0.0
  %654 = vmatpush1.msra.mxu0 %v23
  %655 = vmatprep.subr.mxu0 0.0
  %656 = vmatpush1.msra.mxu0 0.0
  %657 = vmatprep.subr.mxu0 0.0
  %658 = vmatpush1.msra.mxu0 0.0
  %659 = vmatprep.subr.mxu0 0.0
  %660 = vmatpush1.msra.mxu0 0.0
  %661 = vmatprep.subr.mxu0 0.0
  %662 = vmatpush1.msra.mxu0 0.0
  %663 = vmatprep.subr.mxu0 0.0
  %664 = vmatpush1.msra.mxu0 0.0
  %665 = vmatprep.subr.mxu0 0.0
  %666 = vmatpush1.msra.mxu0 0.0
  %667 = vmatprep.subr.mxu0 0.0
  %668 = vmatpush1.msra.mxu0 0.0
  %669 = vmatprep.subr.mxu0 0.0
  %670 = vmatpush1.msra.mxu0 0.0
  %671 = vmatprep.subr.mxu0 0.0
  %672 = vmatpush1.msra.mxu0 0.0
  %673 = vmatprep.subr.mxu0 0.0
  %674 = vmatpush1.msra.mxu0 0.0
  %675 = vmatprep.subr.mxu0 0.0
  %676 = vmatpush1.msra.mxu0 0.0
  %677 = vmatprep.subr.mxu0 0.0
  %678 = vmatpush1.msra.mxu0 0.0
  %679 = vmatprep.subr.mxu0 0.0
  %680 = vmatpush1.msra.mxu0 0.0
  %681 = vmatprep.subr.mxu0 0.0
  %682 = vmatpush1.msra.mxu0 0.0
  %683 = vmatprep.subr.mxu0 0.0
  %684 = vmatpush1.msra.mxu0 0.0
  %685 = vmatprep.subr.mxu0 0.0
  %686 = vmatpush1.msra.mxu0 0.0
  %687 = vmatprep.subr.mxu0 0.0
  %688 = vmatpush1.msra.mxu0 0.0
  %689 = vmatprep.subr.mxu0 0.0
  %690 = vmatpush1.msra.mxu0 0.0
  %691 = vmatprep.subr.mxu0 0.0
  %692 = vmatpush1.msra.mxu0 0.0
  %693 = vmatprep.subr.mxu0 0.0
  %694 = vmatpush1.msra.mxu0 0.0
  %695 = vmatprep.subr.mxu0 0.0
  %696 = vmatpush1.msra.mxu0 0.0
  %697 = vmatprep.subr.mxu0 0.0
  %698 = vmatpush1.msra.mxu0 0.0
  %699 = vmatprep.subr.mxu0 0.0
  %700 = vmatpush1.msra.mxu0 0.0
  %701 = vmatprep.subr.mxu0 0.0
  %702 = vmatpush1.msra.mxu0 0.0
  %703 = vmatprep.subr.mxu0 0.0
  %704 = vmatpush1.msra.mxu0 0.0
  %705 = vmatprep.subr.mxu0 0.0
  %706 = vmatpush1.msra.mxu0 0.0
  %707 = vmatprep.subr.mxu0 0.0
  %708 = vmatpush1.msra.mxu0 0.0
  %709 = vmatprep.subr.mxu0 0.0
  %710 = vmatpush1.msra.mxu0 0.0
  %711 = vmatprep.mubr.f32.mxu0 0.0
  %712 = vmatmul.mubr.f32.gmra.mrb[0].mxu0 %v645
  %v713 = vpop.f32.mrb[0].mxu0
  %v714 = vadd.f32 0.0, %v713
  %v715 = vpop.f32.mrb[0].mxu0
  %716 = vdwg.mxu0
  %v717 = vadd.f32 %v644, %v714
  %v718 = vxor.u32 %v717, 2147483648
  %v719 = vmul.f32 %v718, 1.442695
  %v720 = vpow.pop %v719
  %v721 = vadd.f32 %v720, 1.0
  %v722 = vrcp.pop %v721
  %v723 = vmul.f32 1.0, %v722
  %v724 = vtanh.pop %v717
  %v725 = vmul.f32 %v723, %v632
  %727 = vrot.lane.b32.xlu0 %v724, 64
  %v728 = vpop.permute.xlu0 %727
  %v730 = vmul.f32 %v723, %v728
  %732 = vrot.lane.b32.xlu0 %v730, 32
  %v733 = vpop.permute.xlu0 %732
  %v735 = vadd.f32 %v725, %v733
  %v736 = vtanh.pop %v735
  %738 = vrot.lane.b32.xlu0 %v736, 64
  %v739 = vpop.permute.xlu0 %738
  %v741 = vmul.f32 %v723, %v739
  %743 = vrot.lane.b32.xlu0 %v741, 32
  %v744 = vpop.permute.xlu0 %743
  %746 = vst.msk [vmem:[#allocation2 + $0x30] sm:$0xff] %vm25, %v744
  %v747 = vld [vmem:[%s0 + $0x38] sm:$0xff]
  %v748 = vsel %vm25, %v744, 0
  %750 = vmatprep.subr.mxu0 0.0
  %751 = vmatpush1.msra.mxu0 %v20
  %752 = vmatprep.subr.mxu0 0.0
  %753 = vmatpush1.msra.mxu0 %v21
  %754 = vmatprep.subr.mxu0 0.0
  %755 = vmatpush1.msra.mxu0 %v22
  %756 = vmatprep.subr.mxu0 0.0
  %757 = vmatpush1.msra.mxu0 %v23
  %758 = vmatprep.subr.mxu0 0.0
  %759 = vmatpush1.msra.mxu0 0.0
  %760 = vmatprep.subr.mxu0 0.0
  %761 = vmatpush1.msra.mxu0 0.0
  %762 = vmatprep.subr.mxu0 0.0
  %763 = vmatpush1.msra.mxu0 0.0
  %764 = vmatprep.subr.mxu0 0.0
  %765 = vmatpush1.msra.mxu0 0.0
  %766 = vmatprep.subr.mxu0 0.0
  %767 = vmatpush1.msra.mxu0 0.0
  %768 = vmatprep.subr.mxu0 0.0
  %769 = vmatpush1.msra.mxu0 0.0
  %770 = vmatprep.subr.mxu0 0.0
  %771 = vmatpush1.msra.mxu0 0.0
  %772 = vmatprep.subr.mxu0 0.0
  %773 = vmatpush1.msra.mxu0 0.0
  %774 = vmatprep.subr.mxu0 0.0
  %775 = vmatpush1.msra.mxu0 0.0
  %776 = vmatprep.subr.mxu0 0.0
  %777 = vmatpush1.msra.mxu0 0.0
  %778 = vmatprep.subr.mxu0 0.0
  %779 = vmatpush1.msra.mxu0 0.0
  %780 = vmatprep.subr.mxu0 0.0
  %781 = vmatpush1.msra.mxu0 0.0
  %782 = vmatprep.subr.mxu0 0.0
  %783 = vmatpush1.msra.mxu0 0.0
  %784 = vmatprep.subr.mxu0 0.0
  %785 = vmatpush1.msra.mxu0 0.0
  %786 = vmatprep.subr.mxu0 0.0
  %787 = vmatpush1.msra.mxu0 0.0
  %788 = vmatprep.subr.mxu0 0.0
  %789 = vmatpush1.msra.mxu0 0.0
  %790 = vmatprep.subr.mxu0 0.0
  %791 = vmatpush1.msra.mxu0 0.0
  %792 = vmatprep.subr.mxu0 0.0
  %793 = vmatpush1.msra.mxu0 0.0
  %794 = vmatprep.subr.mxu0 0.0
  %795 = vmatpush1.msra.mxu0 0.0
  %796 = vmatprep.subr.mxu0 0.0
  %797 = vmatpush1.msra.mxu0 0.0
  %798 = vmatprep.subr.mxu0 0.0
  %799 = vmatpush1.msra.mxu0 0.0
  %800 = vmatprep.subr.mxu0 0.0
  %801 = vmatpush1.msra.mxu0 0.0
  %802 = vmatprep.subr.mxu0 0.0
  %803 = vmatpush1.msra.mxu0 0.0
  %804 = vmatprep.subr.mxu0 0.0
  %805 = vmatpush1.msra.mxu0 0.0
  %806 = vmatprep.subr.mxu0 0.0
  %807 = vmatpush1.msra.mxu0 0.0
  %808 = vmatprep.subr.mxu0 0.0
  %809 = vmatpush1.msra.mxu0 0.0
  %810 = vmatprep.subr.mxu0 0.0
  %811 = vmatpush1.msra.mxu0 0.0
  %812 = vmatprep.subr.mxu0 0.0
  %813 = vmatpush1.msra.mxu0 0.0
  %814 = vmatprep.mubr.f32.mxu0 0.0
  %815 = vmatmul.mubr.f32.gmra.mrb[0].mxu0 %v748
  %v816 = vpop.f32.mrb[0].mxu0
  %v817 = vadd.f32 0.0, %v816
  %v818 = vpop.f32.mrb[0].mxu0
  %819 = vdwg.mxu0
  %v820 = vadd.f32 %v747, %v817
  %v821 = vxor.u32 %v820, 2147483648
  %v822 = vmul.f32 %v821, 1.442695
  %v823 = vpow.pop %v822
  %v824 = vadd.f32 %v823, 1.0
  %v825 = vrcp.pop %v824
  %v826 = vmul.f32 1.0, %v825
  %v827 = vtanh.pop %v820
  %v828 = vmul.f32 %v826, %v735
  %830 = vrot.lane.b32.xlu0 %v827, 64
  %v831 = vpop.permute.xlu0 %830
  %v833 = vmul.f32 %v826, %v831
  %835 = vrot.lane.b32.xlu0 %v833, 32
  %v836 = vpop.permute.xlu0 %835
  %v838 = vadd.f32 %v828, %v836
  %v839 = vtanh.pop %v838
  %841 = vrot.lane.b32.xlu0 %v839, 64
  %v842 = vpop.permute.xlu0 %841
  %v844 = vmul.f32 %v826, %v842
  %846 = vrot.lane.b32.xlu0 %v844, 32
  %v847 = vpop.permute.xlu0 %846
  %849 = vst.msk [vmem:[#allocation2 + $0x38] sm:$0xff] %vm25, %v847
  %v850 = vld [vmem:[#allocation2] sm:$0xff]
  %v851 = vld [vmem:[#allocation2 + $0x8] sm:$0xff]
  %v852 = vld [vmem:[#allocation2 + $0x10] sm:$0xff]
  %v853 = vld [vmem:[#allocation2 + $0x18] sm:$0xff]
  %v854 = vld [vmem:[#allocation2 + $0x20] sm:$0xff]
  %v855 = vld [vmem:[#allocation2 + $0x28] sm:$0xff]
  %v856 = vld [vmem:[#allocation2 + $0x30] sm:$0xff]
  %v857 = vld [vmem:[#allocation2 + $0x38] sm:$0xff]
  %v858 = vld [vmem:[%s2] sm:$0xff]
  %v859 = vld [vmem:[%s2 + $0x8] sm:$0xff]
  %v860 = vld [vmem:[%s2 + $0x10] sm:$0xff]
  %v861 = vld [vmem:[%s2 + $0x18] sm:$0xff]
  %v862 = vld [vmem:[%s3] sm:$0x1]
  %v864 = vlaneseq
  %v865 = vshrl.u32 %v864, 7
  %v866 = vsub.s32 0, %v865
  %v867 = vrot.slane %v862, %v866
  %v870 = vsel %vm25, %v850, 0
  %v873 = vsel %vm25, %v851, 0
  %v876 = vsel %vm25, %v852, 0
  %v879 = vsel %vm25, %v853, 0
  %v882 = vsel %vm25, %v854, 0
  %v885 = vsel %vm25, %v855, 0
  %v888 = vsel %vm25, %v856, 0
  %v891 = vsel %vm25, %v857, 0
  %893 = vmatprep.subr.mxu0 0.0
  %894 = vmatpush1.msra.mxu0 %v858
  %895 = vmatprep.subr.mxu0 0.0
  %896 = vmatpush1.msra.mxu0 %v859
  %897 = vmatprep.subr.mxu0 0.0
  %898 = vmatpush1.msra.mxu0 %v860
  %899 = vmatprep.subr.mxu0 0.0
  %900 = vmatpush1.msra.mxu0 %v861
  %901 = vmatprep.subr.mxu0 0.0
  %902 = vmatpush1.msra.mxu0 0.0
  %903 = vmatprep.subr.mxu0 0.0
  %904 = vmatpush1.msra.mxu0 0.0
  %905 = vmatprep.subr.mxu0 0.0
  %906 = vmatpush1.msra.mxu0 0.0
  %907 = vmatprep.subr.mxu0 0.0
  %908 = vmatpush1.msra.mxu0 0.0
  %909 = vmatprep.subr.mxu0 0.0
  %910 = vmatpush1.msra.mxu0 0.0
  %911 = vmatprep.subr.mxu0 0.0
  %912 = vmatpush1.msra.mxu0 0.0
  %913 = vmatprep.subr.mxu0 0.0
  %914 = vmatpush1.msra.mxu0 0.0
  %915 = vmatprep.subr.mxu0 0.0
  %916 = vmatpush1.msra.mxu0 0.0
  %917 = vmatprep.subr.mxu0 0.0
  %918 = vmatpush1.msra.mxu0 0.0
  %919 = vmatprep.subr.mxu0 0.0
  %920 = vmatpush1.msra.mxu0 0.0
  %921 = vmatprep.subr.mxu0 0.0
  %922 = vmatpush1.msra.mxu0 0.0
  %923 = vmatprep.subr.mxu0 0.0
  %924 = vmatpush1.msra.mxu0 0.0
  %925 = vmatprep.subr.mxu0 0.0
  %926 = vmatpush1.msra.mxu0 0.0
  %927 = vmatprep.subr.mxu0 0.0
  %928 = vmatpush1.msra.mxu0 0.0
  %929 = vmatprep.subr.mxu0 0.0
  %930 = vmatpush1.msra.mxu0 0.0
  %931 = vmatprep.subr.mxu0 0.0
  %932 = vmatpush1.msra.mxu0 0.0
  %933 = vmatprep.subr.mxu0 0.0
  %934 = vmatpush1.msra.mxu0 0.0
  %935 = vmatprep.subr.mxu0 0.0
  %936 = vmatpush1.msra.mxu0 0.0
  %937 = vmatprep.subr.mxu0 0.0
  %938 = vmatpush1.msra.mxu0 0.0
  %939 = vmatprep.subr.mxu0 0.0
  %940 = vmatpush1.msra.mxu0 0.0
  %941 = vmatprep.subr.mxu0 0.0
  %942 = vmatpush1.msra.mxu0 0.0
  %943 = vmatprep.subr.mxu0 0.0
  %944 = vmatpush1.msra.mxu0 0.0
  %945 = vmatprep.subr.mxu0 0.0
  %946 = vmatpush1.msra.mxu0 0.0
  %947 = vmatprep.subr.mxu0 0.0
  %948 = vmatpush1.msra.mxu0 0.0
  %949 = vmatprep.subr.mxu0 0.0
  %950 = vmatpush1.msra.mxu0 0.0
  %951 = vmatprep.subr.mxu0 0.0
  %952 = vmatpush1.msra.mxu0 0.0
  %953 = vmatprep.subr.mxu0 0.0
  %954 = vmatpush1.msra.mxu0 0.0
  %955 = vmatprep.subr.mxu0 0.0
  %956 = vmatpush1.msra.mxu0 0.0
  %957 = vmatprep.mubr.f32.mxu0 0.0
  %958 = vmatmul.mubr.f32.gmra.mrb[0].mxu0 %v870
  %v959 = vpop.f32.mrb[0].mxu0
  %v960 = vadd.f32 %v867, %v959
  %v961 = vpop.f32.mrb[0].mxu0
  %962 = vmatprep.mubr.f32.mxu0 0.0
  %963 = vmatmul.mubr.f32.gmra.mrb[0].mxu0 %v873
  %v964 = vpop.f32.mrb[0].mxu0
  %v965 = vadd.f32 %v867, %v964
  %v966 = vpop.f32.mrb[0].mxu0
  %967 = vmatprep.mubr.f32.mxu0 0.0
  %968 = vmatmul.mubr.f32.gmra.mrb[0].mxu0 %v876
  %v969 = vpop.f32.mrb[0].mxu0
  %v970 = vadd.f32 %v867, %v969
  %v971 = vpop.f32.mrb[0].mxu0
  %972 = vmatprep.mubr.f32.mxu0 0.0
  %973 = vmatmul.mubr.f32.gmra.mrb[0].mxu0 %v879
  %v974 = vpop.f32.mrb[0].mxu0
  %v975 = vadd.f32 %v867, %v974
  %v976 = vpop.f32.mrb[0].mxu0
  %977 = vmatprep.mubr.f32.mxu0 0.0
  %978 = vmatmul.mubr.f32.gmra.mrb[0].mxu0 %v882
  %v979 = vpop.f32.mrb[0].mxu0
  %v980 = vadd.f32 %v867, %v979
  %v981 = vpop.f32.mrb[0].mxu0
  %982 = vmatprep.mubr.f32.mxu0 0.0
  %983 = vmatmul.mubr.f32.gmra.mrb[0].mxu0 %v885
  %v984 = vpop.f32.mrb[0].mxu0
  %v985 = vadd.f32 %v867, %v984
  %v986 = vpop.f32.mrb[0].mxu0
  %987 = vmatprep.mubr.f32.mxu0 0.0
  %988 = vmatmul.mubr.f32.gmra.mrb[0].mxu0 %v888
  %v989 = vpop.f32.mrb[0].mxu0
  %v990 = vadd.f32 %v867, %v989
  %v991 = vpop.f32.mrb[0].mxu0
  %992 = vmatprep.mubr.f32.mxu0 0.0
  %993 = vmatmul.mubr.f32.gmra.mrb[0].mxu0 %v891
  %v994 = vpop.f32.mrb[0].mxu0
  %v995 = vadd.f32 %v867, %v994
  %v996 = vpop.f32.mrb[0].mxu0
  %997 = vdwg.mxu0
  %998 = vst [vmem:[#allocation3] sm:$0xff] %v960
  %999 = vst [vmem:[#allocation3 + $0x8] sm:$0xff] %v965
  %1000 = vst [vmem:[#allocation3 + $0x10] sm:$0xff] %v970
  %1001 = vst [vmem:[#allocation3 + $0x18] sm:$0xff] %v975
  %1002 = vst [vmem:[#allocation3 + $0x20] sm:$0xff] %v980
  %1003 = vst [vmem:[#allocation3 + $0x28] sm:$0xff] %v985
  %1004 = vst [vmem:[#allocation3 + $0x30] sm:$0xff] %v990
  %1005 = vst [vmem:[#allocation3 + $0x38] sm:$0xff] %v995
  %v1006 = vld [vmem:[%s4] sm:$0xff]
  %v1007 = vld [vmem:[%s4 + $0x8] sm:$0xff]
  %v1008 = vld [vmem:[%s4 + $0x10] sm:$0xff]
  %v1009 = vld [vmem:[%s4 + $0x18] sm:$0xff]
  %v1010 = vld [vmem:[#allocation3] sm:$0xff]
  %1011 = vmatprep.subr.mxu0 0.0
  %1012 = vmatpush1.msra.mxu0 %v1006
  %1013 = vmatprep.subr.mxu0 0.0
  %1014 = vmatpush1.msra.mxu0 %v1007
  %1015 = vmatprep.subr.mxu0 0.0
  %1016 = vmatpush1.msra.mxu0 %v1008
  %1017 = vmatprep.subr.mxu0 0.0
  %1018 = vmatpush1.msra.mxu0 %v1009
  %1019 = vmatprep.subr.mxu0 0.0
  %1020 = vmatpush1.msra.mxu0 0.0
  %1021 = vmatprep.subr.mxu0 0.0
  %1022 = vmatpush1.msra.mxu0 0.0
  %1023 = vmatprep.subr.mxu0 0.0
  %1024 = vmatpush1.msra.mxu0 0.0
  %1025 = vmatprep.subr.mxu0 0.0
  %1026 = vmatpush1.msra.mxu0 0.0
  %1027 = vmatprep.subr.mxu0 0.0
  %1028 = vmatpush1.msra.mxu0 0.0
  %1029 = vmatprep.subr.mxu0 0.0
  %1030 = vmatpush1.msra.mxu0 0.0
  %1031 = vmatprep.subr.mxu0 0.0
  %1032 = vmatpush1.msra.mxu0 0.0
  %1033 = vmatprep.subr.mxu0 0.0
  %1034 = vmatpush1.msra.mxu0 0.0
  %1035 = vmatprep.subr.mxu0 0.0
  %1036 = vmatpush1.msra.mxu0 0.0
  %1037 = vmatprep.subr.mxu0 0.0
  %1038 = vmatpush1.msra.mxu0 0.0
  %1039 = vmatprep.subr.mxu0 0.0
  %1040 = vmatpush1.msra.mxu0 0.0
  %1041 = vmatprep.subr.mxu0 0.0
  %1042 = vmatpush1.msra.mxu0 0.0
  %1043 = vmatprep.subr.mxu0 0.0
  %1044 = vmatpush1.msra.mxu0 0.0
  %1045 = vmatprep.subr.mxu0 0.0
  %1046 = vmatpush1.msra.mxu0 0.0
  %1047 = vmatprep.subr.mxu0 0.0
  %1048 = vmatpush1.msra.mxu0 0.0
  %1049 = vmatprep.subr.mxu0 0.0
  %1050 = vmatpush1.msra.mxu0 0.0
  %1051 = vmatprep.subr.mxu0 0.0
  %1052 = vmatpush1.msra.mxu0 0.0
  %1053 = vmatprep.subr.mxu0 0.0
  %1054 = vmatpush1.msra.mxu0 0.0
  %1055 = vmatprep.subr.mxu0 0.0
  %1056 = vmatpush1.msra.mxu0 0.0
  %1057 = vmatprep.subr.mxu0 0.0
  %1058 = vmatpush1.msra.mxu0 0.0
  %1059 = vmatprep.subr.mxu0 0.0
  %1060 = vmatpush1.msra.mxu0 0.0
  %1061 = vmatprep.subr.mxu0 0.0
  %1062 = vmatpush1.msra.mxu0 0.0
  %1063 = vmatprep.subr.mxu0 0.0
  %1064 = vmatpush1.msra.mxu0 0.0
  %1065 = vmatprep.subr.mxu0 0.0
  %1066 = vmatpush1.msra.mxu0 0.0
  %1067 = vmatprep.subr.mxu0 0.0
  %1068 = vmatpush1.msra.mxu0 0.0
  %1069 = vmatprep.subr.mxu0 0.0
  %1070 = vmatpush1.msra.mxu0 0.0
  %1071 = vmatprep.subr.mxu0 0.0
  %1072 = vmatpush1.msra.mxu0 0.0
  %1073 = vmatprep.subr.mxu0 0.0
  %1074 = vmatpush1.msra.mxu0 0.0
  %1075 = vmatprep.mubr.f32.mxu0 0.0
  %1076 = vmatmul.mubr.f32.gmra.mrb[0].mxu0 %v27
  %v1077 = vpop.f32.mrb[0].mxu0
  %v1078 = vadd.f32 0.0, %v1077
  %v1079 = vpop.f32.mrb[0].mxu0
  %1080 = vdwg.mxu0
  %v1081 = vadd.f32 %v1010, %v1078
  %v1082 = vxor.u32 %v1081, 2147483648
  %v1083 = vmul.f32 %v1082, 1.442695
  %v1084 = vpow.pop %v1083
  %v1085 = vadd.f32 %v1084, 1.0
  %v1086 = vrcp.pop %v1085
  %v1087 = vmul.f32 1.0, %v1086
  %v1088 = vtanh.pop %v1081
  %v1089 = vmul.f32 %v1087, 0.0
  %1091 = vrot.lane.b32.xlu0 %v1088, 64
  %v1092 = vpop.permute.xlu0 %1091
  %v1094 = vmul.f32 %v1087, %v1092
  %1096 = vrot.lane.b32.xlu0 %v1094, 32
  %v1097 = vpop.permute.xlu0 %1096
  %v1099 = vadd.f32 %v1089, %v1097
  %v1100 = vtanh.pop %v1099
  %1102 = vrot.lane.b32.xlu0 %v1100, 64
  %v1103 = vpop.permute.xlu0 %1102
  %v1105 = vmul.f32 %v1087, %v1103
  %v1106 = vld [vmem:[#allocation3 + $0x8] sm:$0xff]
  %1108 = vrot.lane.b32.xlu0 %v1105, 32
  %v1109 = vpop.permute.xlu0 %1108
  %v1110 = vsel %vm25, %v1109, 0
  %1112 = vmatprep.subr.mxu0 0.0
  %1113 = vmatpush1.msra.mxu0 %v1006
  %1114 = vmatprep.subr.mxu0 0.0
  %1115 = vmatpush1.msra.mxu0 %v1007
  %1116 = vmatprep.subr.mxu0 0.0
  %1117 = vmatpush1.msra.mxu0 %v1008
  %1118 = vmatprep.subr.mxu0 0.0
  %1119 = vmatpush1.msra.mxu0 %v1009
  %1120 = vmatprep.subr.mxu0 0.0
  %1121 = vmatpush1.msra.mxu0 0.0
  %1122 = vmatprep.subr.mxu0 0.0
  %1123 = vmatpush1.msra.mxu0 0.0
  %1124 = vmatprep.subr.mxu0 0.0
  %1125 = vmatpush1.msra.mxu0 0.0
  %1126 = vmatprep.subr.mxu0 0.0
  %1127 = vmatpush1.msra.mxu0 0.0
  %1128 = vmatprep.subr.mxu0 0.0
  %1129 = vmatpush1.msra.mxu0 0.0
  %1130 = vmatprep.subr.mxu0 0.0
  %1131 = vmatpush1.msra.mxu0 0.0
  %1132 = vmatprep.subr.mxu0 0.0
  %1133 = vmatpush1.msra.mxu0 0.0
  %1134 = vmatprep.subr.mxu0 0.0
  %1135 = vmatpush1.msra.mxu0 0.0
  %1136 = vmatprep.subr.mxu0 0.0
  %1137 = vmatpush1.msra.mxu0 0.0
  %1138 = vmatprep.subr.mxu0 0.0
  %1139 = vmatpush1.msra.mxu0 0.0
  %1140 = vmatprep.subr.mxu0 0.0
  %1141 = vmatpush1.msra.mxu0 0.0
  %1142 = vmatprep.subr.mxu0 0.0
  %1143 = vmatpush1.msra.mxu0 0.0
  %1144 = vmatprep.subr.mxu0 0.0
  %1145 = vmatpush1.msra.mxu0 0.0
  %1146 = vmatprep.subr.mxu0 0.0
  %1147 = vmatpush1.msra.mxu0 0.0
  %1148 = vmatprep.subr.mxu0 0.0
  %1149 = vmatpush1.msra.mxu0 0.0
  %1150 = vmatprep.subr.mxu0 0.0
  %1151 = vmatpush1.msra.mxu0 0.0
  %1152 = vmatprep.subr.mxu0 0.0
  %1153 = vmatpush1.msra.mxu0 0.0
  %1154 = vmatprep.subr.mxu0 0.0
  %1155 = vmatpush1.msra.mxu0 0.0
  %1156 = vmatprep.subr.mxu0 0.0
  %1157 = vmatpush1.msra.mxu0 0.0
  %1158 = vmatprep.subr.mxu0 0.0
  %1159 = vmatpush1.msra.mxu0 0.0
  %1160 = vmatprep.subr.mxu0 0.0
  %1161 = vmatpush1.msra.mxu0 0.0
  %1162 = vmatprep.subr.mxu0 0.0
  %1163 = vmatpush1.msra.mxu0 0.0
  %1164 = vmatprep.subr.mxu0 0.0
  %1165 = vmatpush1.msra.mxu0 0.0
  %1166 = vmatprep.subr.mxu0 0.0
  %1167 = vmatpush1.msra.mxu0 0.0
  %1168 = vmatprep.subr.mxu0 0.0
  %1169 = vmatpush1.msra.mxu0 0.0
  %1170 = vmatprep.subr.mxu0 0.0
  %1171 = vmatpush1.msra.mxu0 0.0
  %1172 = vmatprep.subr.mxu0 0.0
  %1173 = vmatpush1.msra.mxu0 0.0
  %1174 = vmatprep.subr.mxu0 0.0
  %1175 = vmatpush1.msra.mxu0 0.0
  %1176 = vmatprep.mubr.f32.mxu0 0.0
  %1177 = vmatmul.mubr.f32.gmra.mrb[0].mxu0 %v1110
  %v1178 = vpop.f32.mrb[0].mxu0
  %v1179 = vadd.f32 0.0, %v1178
  %v1180 = vpop.f32.mrb[0].mxu0
  %1181 = vdwg.mxu0
  %v1182 = vadd.f32 %v1106, %v1179
  %v1183 = vxor.u32 %v1182, 2147483648
  %v1184 = vmul.f32 %v1183, 1.442695
  %v1185 = vpow.pop %v1184
  %v1186 = vadd.f32 %v1185, 1.0
  %v1187 = vrcp.pop %v1186
  %v1188 = vmul.f32 1.0, %v1187
  %v1189 = vtanh.pop %v1182
  %v1190 = vmul.f32 %v1188, %v1099
  %1192 = vrot.lane.b32.xlu0 %v1189, 64
  %v1193 = vpop.permute.xlu0 %1192
  %v1195 = vmul.f32 %v1188, %v1193
  %1197 = vrot.lane.b32.xlu0 %v1195, 32
  %v1198 = vpop.permute.xlu0 %1197
  %v1200 = vadd.f32 %v1190, %v1198
  %v1201 = vtanh.pop %v1200
  %1203 = vrot.lane.b32.xlu0 %v1201, 64
  %v1204 = vpop.permute.xlu0 %1203
  %v1206 = vmul.f32 %v1188, %v1204
  %v1207 = vld [vmem:[#allocation3 + $0x10] sm:$0xff]
  %1209 = vrot.lane.b32.xlu0 %v1206, 32
  %v1210 = vpop.permute.xlu0 %1209
  %v1211 = vsel %vm25, %v1210, 0
  %1213 = vmatprep.subr.mxu0 0.0
  %1214 = vmatpush1.msra.mxu0 %v1006
  %1215 = vmatprep.subr.mxu0 0.0
  %1216 = vmatpush1.msra.mxu0 %v1007
  %1217 = vmatprep.subr.mxu0 0.0
  %1218 = vmatpush1.msra.mxu0 %v1008
  %1219 = vmatprep.subr.mxu0 0.0
  %1220 = vmatpush1.msra.mxu0 %v1009
  %1221 = vmatprep.subr.mxu0 0.0
  %1222 = vmatpush1.msra.mxu0 0.0
  %1223 = vmatprep.subr.mxu0 0.0
  %1224 = vmatpush1.msra.mxu0 0.0
  %1225 = vmatprep.subr.mxu0 0.0
  %1226 = vmatpush1.msra.mxu0 0.0
  %1227 = vmatprep.subr.mxu0 0.0
  %1228 = vmatpush1.msra.mxu0 0.0
  %1229 = vmatprep.subr.mxu0 0.0
  %1230 = vmatpush1.msra.mxu0 0.0
  %1231 = vmatprep.subr.mxu0 0.0
  %1232 = vmatpush1.msra.mxu0 0.0
  %1233 = vmatprep.subr.mxu0 0.0
  %1234 = vmatpush1.msra.mxu0 0.0
  %1235 = vmatprep.subr.mxu0 0.0
  %1236 = vmatpush1.msra.mxu0 0.0
  %1237 = vmatprep.subr.mxu0 0.0
  %1238 = vmatpush1.msra.mxu0 0.0
  %1239 = vmatprep.subr.mxu0 0.0
  %1240 = vmatpush1.msra.mxu0 0.0
  %1241 = vmatprep.subr.mxu0 0.0
  %1242 = vmatpush1.msra.mxu0 0.0
  %1243 = vmatprep.subr.mxu0 0.0
  %1244 = vmatpush1.msra.mxu0 0.0
  %1245 = vmatprep.subr.mxu0 0.0
  %1246 = vmatpush1.msra.mxu0 0.0
  %1247 = vmatprep.subr.mxu0 0.0
  %1248 = vmatpush1.msra.mxu0 0.0
  %1249 = vmatprep.subr.mxu0 0.0
  %1250 = vmatpush1.msra.mxu0 0.0
  %1251 = vmatprep.subr.mxu0 0.0
  %1252 = vmatpush1.msra.mxu0 0.0
  %1253 = vmatprep.subr.mxu0 0.0
  %1254 = vmatpush1.msra.mxu0 0.0
  %1255 = vmatprep.subr.mxu0 0.0
  %1256 = vmatpush1.msra.mxu0 0.0
  %1257 = vmatprep.subr.mxu0 0.0
  %1258 = vmatpush1.msra.mxu0 0.0
  %1259 = vmatprep.subr.mxu0 0.0
  %1260 = vmatpush1.msra.mxu0 0.0
  %1261 = vmatprep.subr.mxu0 0.0
  %1262 = vmatpush1.msra.mxu0 0.0
  %1263 = vmatprep.subr.mxu0 0.0
  %1264 = vmatpush1.msra.mxu0 0.0
  %1265 = vmatprep.subr.mxu0 0.0
  %1266 = vmatpush1.msra.mxu0 0.0
  %1267 = vmatprep.subr.mxu0 0.0
  %1268 = vmatpush1.msra.mxu0 0.0
  %1269 = vmatprep.subr.mxu0 0.0
  %1270 = vmatpush1.msra.mxu0 0.0
  %1271 = vmatprep.subr.mxu0 0.0
  %1272 = vmatpush1.msra.mxu0 0.0
  %1273 = vmatprep.subr.mxu0 0.0
  %1274 = vmatpush1.msra.mxu0 0.0
  %1275 = vmatprep.subr.mxu0 0.0
  %1276 = vmatpush1.msra.mxu0 0.0
  %1277 = vmatprep.mubr.f32.mxu0 0.0
  %1278 = vmatmul.mubr.f32.gmra.mrb[0].mxu0 %v1211
  %v1279 = vpop.f32.mrb[0].mxu0
  %v1280 = vadd.f32 0.0, %v1279
  %v1281 = vpop.f32.mrb[0].mxu0
  %1282 = vdwg.mxu0
  %v1283 = vadd.f32 %v1207, %v1280
  %v1284 = vxor.u32 %v1283, 2147483648
  %v1285 = vmul.f32 %v1284, 1.442695
  %v1286 = vpow.pop %v1285
  %v1287 = vadd.f32 %v1286, 1.0
  %v1288 = vrcp.pop %v1287
  %v1289 = vmul.f32 1.0, %v1288
  %v1290 = vtanh.pop %v1283
  %v1291 = vmul.f32 %v1289, %v1200
  %1293 = vrot.lane.b32.xlu0 %v1290, 64
  %v1294 = vpop.permute.xlu0 %1293
  %v1296 = vmul.f32 %v1289, %v1294
  %1298 = vrot.lane.b32.xlu0 %v1296, 32
  %v1299 = vpop.permute.xlu0 %1298
  %v1301 = vadd.f32 %v1291, %v1299
  %v1302 = vtanh.pop %v1301
  %1304 = vrot.lane.b32.xlu0 %v1302, 64
  %v1305 = vpop.permute.xlu0 %1304
  %v1307 = vmul.f32 %v1289, %v1305
  %v1308 = vld [vmem:[#allocation3 + $0x18] sm:$0xff]
  %1310 = vrot.lane.b32.xlu0 %v1307, 32
  %v1311 = vpop.permute.xlu0 %1310
  %v1312 = vsel %vm25, %v1311, 0
  %1314 = vmatprep.subr.mxu0 0.0
  %1315 = vmatpush1.msra.mxu0 %v1006
  %1316 = vmatprep.subr.mxu0 0.0
  %1317 = vmatpush1.msra.mxu0 %v1007
  %1318 = vmatprep.subr.mxu0 0.0
  %1319 = vmatpush1.msra.mxu0 %v1008
  %1320 = vmatprep.subr.mxu0 0.0
  %1321 = vmatpush1.msra.mxu0 %v1009
  %1322 = vmatprep.subr.mxu0 0.0
  %1323 = vmatpush1.msra.mxu0 0.0
  %1324 = vmatprep.subr.mxu0 0.0
  %1325 = vmatpush1.msra.mxu0 0.0
  %1326 = vmatprep.subr.mxu0 0.0
  %1327 = vmatpush1.msra.mxu0 0.0
  %1328 = vmatprep.subr.mxu0 0.0
  %1329 = vmatpush1.msra.mxu0 0.0
  %1330 = vmatprep.subr.mxu0 0.0
  %1331 = vmatpush1.msra.mxu0 0.0
  %1332 = vmatprep.subr.mxu0 0.0
  %1333 = vmatpush1.msra.mxu0 0.0
  %1334 = vmatprep.subr.mxu0 0.0
  %1335 = vmatpush1.msra.mxu0 0.0
  %1336 = vmatprep.subr.mxu0 0.0
  %1337 = vmatpush1.msra.mxu0 0.0
  %1338 = vmatprep.subr.mxu0 0.0
  %1339 = vmatpush1.msra.mxu0 0.0
  %1340 = vmatprep.subr.mxu0 0.0
  %1341 = vmatpush1.msra.mxu0 0.0
  %1342 = vmatprep.subr.mxu0 0.0
  %1343 = vmatpush1.msra.mxu0 0.0
  %1344 = vmatprep.subr.mxu0 0.0
  %1345 = vmatpush1.msra.mxu0 0.0
  %1346 = vmatprep.subr.mxu0 0.0
  %1347 = vmatpush1.msra.mxu0 0.0
  %1348 = vmatprep.subr.mxu0 0.0
  %1349 = vmatpush1.msra.mxu0 0.0
  %1350 = vmatprep.subr.mxu0 0.0
  %1351 = vmatpush1.msra.mxu0 0.0
  %1352 = vmatprep.subr.mxu0 0.0
  %1353 = vmatpush1.msra.mxu0 0.0
  %1354 = vmatprep.subr.mxu0 0.0
  %1355 = vmatpush1.msra.mxu0 0.0
  %1356 = vmatprep.subr.mxu0 0.0
  %1357 = vmatpush1.msra.mxu0 0.0
  %1358 = vmatprep.subr.mxu0 0.0
  %1359 = vmatpush1.msra.mxu0 0.0
  %1360 = vmatprep.subr.mxu0 0.0
  %1361 = vmatpush1.msra.mxu0 0.0
  %1362 = vmatprep.subr.mxu0 0.0
  %1363 = vmatpush1.msra.mxu0 0.0
  %1364 = vmatprep.subr.mxu0 0.0
  %1365 = vmatpush1.msra.mxu0 0.0
  %1366 = vmatprep.subr.mxu0 0.0
  %1367 = vmatpush1.msra.mxu0 0.0
  %1368 = vmatprep.subr.mxu0 0.0
  %1369 = vmatpush1.msra.mxu0 0.0
  %1370 = vmatprep.subr.mxu0 0.0
  %1371 = vmatpush1.msra.mxu0 0.0
  %1372 = vmatprep.subr.mxu0 0.0
  %1373 = vmatpush1.msra.mxu0 0.0
  %1374 = vmatprep.subr.mxu0 0.0
  %1375 = vmatpush1.msra.mxu0 0.0
  %1376 = vmatprep.subr.mxu0 0.0
  %1377 = vmatpush1.msra.mxu0 0.0
  %1378 = vmatprep.mubr.f32.mxu0 0.0
  %1379 = vmatmul.mubr.f32.gmra.mrb[0].mxu0 %v1312
  %v1380 = vpop.f32.mrb[0].mxu0
  %v1381 = vadd.f32 0.0, %v1380
  %v1382 = vpop.f32.mrb[0].mxu0
  %1383 = vdwg.mxu0
  %v1384 = vadd.f32 %v1308, %v1381
  %v1385 = vxor.u32 %v1384, 2147483648
  %v1386 = vmul.f32 %v1385, 1.442695
  %v1387 = vpow.pop %v1386
  %v1388 = vadd.f32 %v1387, 1.0
  %v1389 = vrcp.pop %v1388
  %v1390 = vmul.f32 1.0, %v1389
  %v1391 = vtanh.pop %v1384
  %v1392 = vmul.f32 %v1390, %v1301
  %1394 = vrot.lane.b32.xlu0 %v1391, 64
  %v1395 = vpop.permute.xlu0 %1394
  %v1397 = vmul.f32 %v1390, %v1395
  %1399 = vrot.lane.b32.xlu0 %v1397, 32
  %v1400 = vpop.permute.xlu0 %1399
  %v1402 = vadd.f32 %v1392, %v1400
  %v1403 = vtanh.pop %v1402
  %1405 = vrot.lane.b32.xlu0 %v1403, 64
  %v1406 = vpop.permute.xlu0 %1405
  %v1408 = vmul.f32 %v1390, %v1406
  %v1409 = vld [vmem:[#allocation3 + $0x20] sm:$0xff]
  %1411 = vrot.lane.b32.xlu0 %v1408, 32
  %v1412 = vpop.permute.xlu0 %1411
  %v1413 = vsel %vm25, %v1412, 0
  %1415 = vmatprep.subr.mxu0 0.0
  %1416 = vmatpush1.msra.mxu0 %v1006
  %1417 = vmatprep.subr.mxu0 0.0
  %1418 = vmatpush1.msra.mxu0 %v1007
  %1419 = vmatprep.subr.mxu0 0.0
  %1420 = vmatpush1.msra.mxu0 %v1008
  %1421 = vmatprep.subr.mxu0 0.0
  %1422 = vmatpush1.msra.mxu0 %v1009
  %1423 = vmatprep.subr.mxu0 0.0
  %1424 = vmatpush1.msra.mxu0 0.0
  %1425 = vmatprep.subr.mxu0 0.0
  %1426 = vmatpush1.msra.mxu0 0.0
  %1427 = vmatprep.subr.mxu0 0.0
  %1428 = vmatpush1.msra.mxu0 0.0
  %1429 = vmatprep.subr.mxu0 0.0
  %1430 = vmatpush1.msra.mxu0 0.0
  %1431 = vmatprep.subr.mxu0 0.0
  %1432 = vmatpush1.msra.mxu0 0.0
  %1433 = vmatprep.subr.mxu0 0.0
  %1434 = vmatpush1.msra.mxu0 0.0
  %1435 = vmatprep.subr.mxu0 0.0
  %1436 = vmatpush1.msra.mxu0 0.0
  %1437 = vmatprep.subr.mxu0 0.0
  %1438 = vmatpush1.msra.mxu0 0.0
  %1439 = vmatprep.subr.mxu0 0.0
  %1440 = vmatpush1.msra.mxu0 0.0
  %1441 = vmatprep.subr.mxu0 0.0
  %1442 = vmatpush1.msra.mxu0 0.0
  %1443 = vmatprep.subr.mxu0 0.0
  %1444 = vmatpush1.msra.mxu0 0.0
  %1445 = vmatprep.subr.mxu0 0.0
  %1446 = vmatpush1.msra.mxu0 0.0
  %1447 = vmatprep.subr.mxu0 0.0
  %1448 = vmatpush1.msra.mxu0 0.0
  %1449 = vmatprep.subr.mxu0 0.0
  %1450 = vmatpush1.msra.mxu0 0.0
  %1451 = vmatprep.subr.mxu0 0.0
  %1452 = vmatpush1.msra.mxu0 0.0
  %1453 = vmatprep.subr.mxu0 0.0
  %1454 = vmatpush1.msra.mxu0 0.0
  %1455 = vmatprep.subr.mxu0 0.0
  %1456 = vmatpush1.msra.mxu0 0.0
  %1457 = vmatprep.subr.mxu0 0.0
  %1458 = vmatpush1.msra.mxu0 0.0
  %1459 = vmatprep.subr.mxu0 0.0
  %1460 = vmatpush1.msra.mxu0 0.0
  %1461 = vmatprep.subr.mxu0 0.0
  %1462 = vmatpush1.msra.mxu0 0.0
  %1463 = vmatprep.subr.mxu0 0.0
  %1464 = vmatpush1.msra.mxu0 0.0
  %1465 = vmatprep.subr.mxu0 0.0
  %1466 = vmatpush1.msra.mxu0 0.0
  %1467 = vmatprep.subr.mxu0 0.0
  %1468 = vmatpush1.msra.mxu0 0.0
  %1469 = vmatprep.subr.mxu0 0.0
  %1470 = vmatpush1.msra.mxu0 0.0
  %1471 = vmatprep.subr.mxu0 0.0
  %1472 = vmatpush1.msra.mxu0 0.0
  %1473 = vmatprep.subr.mxu0 0.0
  %1474 = vmatpush1.msra.mxu0 0.0
  %1475 = vmatprep.subr.mxu0 0.0
  %1476 = vmatpush1.msra.mxu0 0.0
  %1477 = vmatprep.subr.mxu0 0.0
  %1478 = vmatpush1.msra.mxu0 0.0
  %1479 = vmatprep.mubr.f32.mxu0 0.0
  %1480 = vmatmul.mubr.f32.gmra.mrb[0].mxu0 %v1413
  %v1481 = vpop.f32.mrb[0].mxu0
  %v1482 = vadd.f32 0.0, %v1481
  %v1483 = vpop.f32.mrb[0].mxu0
  %1484 = vdwg.mxu0
  %v1485 = vadd.f32 %v1409, %v1482
  %v1486 = vxor.u32 %v1485, 2147483648
  %v1487 = vmul.f32 %v1486, 1.442695
  %v1488 = vpow.pop %v1487
  %v1489 = vadd.f32 %v1488, 1.0
  %v1490 = vrcp.pop %v1489
  %v1491 = vmul.f32 1.0, %v1490
  %v1492 = vtanh.pop %v1485
  %v1493 = vmul.f32 %v1491, %v1402
  %1495 = vrot.lane.b32.xlu0 %v1492, 64
  %v1496 = vpop.permute.xlu0 %1495
  %v1498 = vmul.f32 %v1491, %v1496
  %1500 = vrot.lane.b32.xlu0 %v1498, 32
  %v1501 = vpop.permute.xlu0 %1500
  %v1503 = vadd.f32 %v1493, %v1501
  %v1504 = vtanh.pop %v1503
  %1506 = vrot.lane.b32.xlu0 %v1504, 64
  %v1507 = vpop.permute.xlu0 %1506
  %v1509 = vmul.f32 %v1491, %v1507
  %v1510 = vld [vmem:[#allocation3 + $0x28] sm:$0xff]
  %1512 = vrot.lane.b32.xlu0 %v1509, 32
  %v1513 = vpop.permute.xlu0 %1512
  %v1514 = vsel %vm25, %v1513, 0
  %1516 = vmatprep.subr.mxu0 0.0
  %1517 = vmatpush1.msra.mxu0 %v1006
  %1518 = vmatprep.subr.mxu0 0.0
  %1519 = vmatpush1.msra.mxu0 %v1007
  %1520 = vmatprep.subr.mxu0 0.0
  %1521 = vmatpush1.msra.mxu0 %v1008
  %1522 = vmatprep.subr.mxu0 0.0
  %1523 = vmatpush1.msra.mxu0 %v1009
  %1524 = vmatprep.subr.mxu0 0.0
  %1525 = vmatpush1.msra.mxu0 0.0
  %1526 = vmatprep.subr.mxu0 0.0
  %1527 = vmatpush1.msra.mxu0 0.0
  %1528 = vmatprep.subr.mxu0 0.0
  %1529 = vmatpush1.msra.mxu0 0.0
  %1530 = vmatprep.subr.mxu0 0.0
  %1531 = vmatpush1.msra.mxu0 0.0
  %1532 = vmatprep.subr.mxu0 0.0
  %1533 = vmatpush1.msra.mxu0 0.0
  %1534 = vmatprep.subr.mxu0 0.0
  %1535 = vmatpush1.msra.mxu0 0.0
  %1536 = vmatprep.subr.mxu0 0.0
  %1537 = vmatpush1.msra.mxu0 0.0
  %1538 = vmatprep.subr.mxu0 0.0
  %1539 = vmatpush1.msra.mxu0 0.0
  %1540 = vmatprep.subr.mxu0 0.0
  %1541 = vmatpush1.msra.mxu0 0.0
  %1542 = vmatprep.subr.mxu0 0.0
  %1543 = vmatpush1.msra.mxu0 0.0
  %1544 = vmatprep.subr.mxu0 0.0
  %1545 = vmatpush1.msra.mxu0 0.0
  %1546 = vmatprep.subr.mxu0 0.0
  %1547 = vmatpush1.msra.mxu0 0.0
  %1548 = vmatprep.subr.mxu0 0.0
  %1549 = vmatpush1.msra.mxu0 0.0
  %1550 = vmatprep.subr.mxu0 0.0
  %1551 = vmatpush1.msra.mxu0 0.0
  %1552 = vmatprep.subr.mxu0 0.0
  %1553 = vmatpush1.msra.mxu0 0.0
  %1554 = vmatprep.subr.mxu0 0.0
  %1555 = vmatpush1.msra.mxu0 0.0
  %1556 = vmatprep.subr.mxu0 0.0
  %1557 = vmatpush1.msra.mxu0 0.0
  %1558 = vmatprep.subr.mxu0 0.0
  %1559 = vmatpush1.msra.mxu0 0.0
  %1560 = vmatprep.subr.mxu0 0.0
  %1561 = vmatpush1.msra.mxu0 0.0
  %1562 = vmatprep.subr.mxu0 0.0
  %1563 = vmatpush1.msra.mxu0 0.0
  %1564 = vmatprep.subr.mxu0 0.0
  %1565 = vmatpush1.msra.mxu0 0.0
  %1566 = vmatprep.subr.mxu0 0.0
  %1567 = vmatpush1.msra.mxu0 0.0
  %1568 = vmatprep.subr.mxu0 0.0
  %1569 = vmatpush1.msra.mxu0 0.0
  %1570 = vmatprep.subr.mxu0 0.0
  %1571 = vmatpush1.msra.mxu0 0.0
  %1572 = vmatprep.subr.mxu0 0.0
  %1573 = vmatpush1.msra.mxu0 0.0
  %1574 = vmatprep.subr.mxu0 0.0
  %1575 = vmatpush1.msra.mxu0 0.0
  %1576 = vmatprep.subr.mxu0 0.0
  %1577 = vmatpush1.msra.mxu0 0.0
  %1578 = vmatprep.subr.mxu0 0.0
  %1579 = vmatpush1.msra.mxu0 0.0
  %1580 = vmatprep.mubr.f32.mxu0 0.0
  %1581 = vmatmul.mubr.f32.gmra.mrb[0].mxu0 %v1514
  %v1582 = vpop.f32.mrb[0].mxu0
  %v1583 = vadd.f32 0.0, %v1582
  %v1584 = vpop.f32.mrb[0].mxu0
  %1585 = vdwg.mxu0
  %v1586 = vadd.f32 %v1510, %v1583
  %v1587 = vxor.u32 %v1586, 2147483648
  %v1588 = vmul.f32 %v1587, 1.442695
  %v1589 = vpow.pop %v1588
  %v1590 = vadd.f32 %v1589, 1.0
  %v1591 = vrcp.pop %v1590
  %v1592 = vmul.f32 1.0, %v1591
  %v1593 = vtanh.pop %v1586
  %v1594 = vmul.f32 %v1592, %v1503
  %1596 = vrot.lane.b32.xlu0 %v1593, 64
  %v1597 = vpop.permute.xlu0 %1596
  %v1599 = vmul.f32 %v1592, %v1597
  %1601 = vrot.lane.b32.xlu0 %v1599, 32
  %v1602 = vpop.permute.xlu0 %1601
  %v1604 = vadd.f32 %v1594, %v1602
  %v1605 = vtanh.pop %v1604
  %1607 = vrot.lane.b32.xlu0 %v1605, 64
  %v1608 = vpop.permute.xlu0 %1607
  %v1610 = vmul.f32 %v1592, %v1608
  %v1611 = vld [vmem:[#allocation3 + $0x30] sm:$0xff]
  %1613 = vrot.lane.b32.xlu0 %v1610, 32
  %v1614 = vpop.permute.xlu0 %1613
  %v1615 = vsel %vm25, %v1614, 0
  %1617 = vmatprep.subr.mxu0 0.0
  %1618 = vmatpush1.msra.mxu0 %v1006
  %1619 = vmatprep.subr.mxu0 0.0
  %1620 = vmatpush1.msra.mxu0 %v1007
  %1621 = vmatprep.subr.mxu0 0.0
  %1622 = vmatpush1.msra.mxu0 %v1008
  %1623 = vmatprep.subr.mxu0 0.0
  %1624 = vmatpush1.msra.mxu0 %v1009
  %1625 = vmatprep.subr.mxu0 0.0
  %1626 = vmatpush1.msra.mxu0 0.0
  %1627 = vmatprep.subr.mxu0 0.0
  %1628 = vmatpush1.msra.mxu0 0.0
  %1629 = vmatprep.subr.mxu0 0.0
  %1630 = vmatpush1.msra.mxu0 0.0
  %1631 = vmatprep.subr.mxu0 0.0
  %1632 = vmatpush1.msra.mxu0 0.0
  %1633 = vmatprep.subr.mxu0 0.0
  %1634 = vmatpush1.msra.mxu0 0.0
  %1635 = vmatprep.subr.mxu0 0.0
  %1636 = vmatpush1.msra.mxu0 0.0
  %1637 = vmatprep.subr.mxu0 0.0
  %1638 = vmatpush1.msra.mxu0 0.0
  %1639 = vmatprep.subr.mxu0 0.0
  %1640 = vmatpush1.msra.mxu0 0.0
  %1641 = vmatprep.subr.mxu0 0.0
  %1642 = vmatpush1.msra.mxu0 0.0
  %1643 = vmatprep.subr.mxu0 0.0
  %1644 = vmatpush1.msra.mxu0 0.0
  %1645 = vmatprep.subr.mxu0 0.0
  %1646 = vmatpush1.msra.mxu0 0.0
  %1647 = vmatprep.subr.mxu0 0.0
  %1648 = vmatpush1.msra.mxu0 0.0
  %1649 = vmatprep.subr.mxu0 0.0
  %1650 = vmatpush1.msra.mxu0 0.0
  %1651 = vmatprep.subr.mxu0 0.0
  %1652 = vmatpush1.msra.mxu0 0.0
  %1653 = vmatprep.subr.mxu0 0.0
  %1654 = vmatpush1.msra.mxu0 0.0
  %1655 = vmatprep.subr.mxu0 0.0
  %1656 = vmatpush1.msra.mxu0 0.0
  %1657 = vmatprep.subr.mxu0 0.0
  %1658 = vmatpush1.msra.mxu0 0.0
  %1659 = vmatprep.subr.mxu0 0.0
  %1660 = vmatpush1.msra.mxu0 0.0
  %1661 = vmatprep.subr.mxu0 0.0
  %1662 = vmatpush1.msra.mxu0 0.0
  %1663 = vmatprep.subr.mxu0 0.0
  %1664 = vmatpush1.msra.mxu0 0.0
  %1665 = vmatprep.subr.mxu0 0.0
  %1666 = vmatpush1.msra.mxu0 0.0
  %1667 = vmatprep.subr.mxu0 0.0
  %1668 = vmatpush1.msra.mxu0 0.0
  %1669 = vmatprep.subr.mxu0 0.0
  %1670 = vmatpush1.msra.mxu0 0.0
  %1671 = vmatprep.subr.mxu0 0.0
  %1672 = vmatpush1.msra.mxu0 0.0
  %1673 = vmatprep.subr.mxu0 0.0
  %1674 = vmatpush1.msra.mxu0 0.0
  %1675 = vmatprep.subr.mxu0 0.0
  %1676 = vmatpush1.msra.mxu0 0.0
  %1677 = vmatprep.subr.mxu0 0.0
  %1678 = vmatpush1.msra.mxu0 0.0
  %1679 = vmatprep.subr.mxu0 0.0
  %1680 = vmatpush1.msra.mxu0 0.0
  %1681 = vmatprep.mubr.f32.mxu0 0.0
  %1682 = vmatmul.mubr.f32.gmra.mrb[0].mxu0 %v1615
  %v1683 = vpop.f32.mrb[0].mxu0
  %v1684 = vadd.f32 0.0, %v1683
  %v1685 = vpop.f32.mrb[0].mxu0
  %1686 = vdwg.mxu0
  %v1687 = vadd.f32 %v1611, %v1684
  %v1688 = vxor.u32 %v1687, 2147483648
  %v1689 = vmul.f32 %v1688, 1.442695
  %v1690 = vpow.pop %v1689
  %v1691 = vadd.f32 %v1690, 1.0
  %v1692 = vrcp.pop %v1691
  %v1693 = vmul.f32 1.0, %v1692
  %v1694 = vtanh.pop %v1687
  %v1695 = vmul.f32 %v1693, %v1604
  %1697 = vrot.lane.b32.xlu0 %v1694, 64
  %v1698 = vpop.permute.xlu0 %1697
  %v1700 = vmul.f32 %v1693, %v1698
  %1702 = vrot.lane.b32.xlu0 %v1700, 32
  %v1703 = vpop.permute.xlu0 %1702
  %v1705 = vadd.f32 %v1695, %v1703
  %v1706 = vtanh.pop %v1705
  %1708 = vrot.lane.b32.xlu0 %v1706, 64
  %v1709 = vpop.permute.xlu0 %1708
  %v1711 = vmul.f32 %v1693, %v1709
  %v1712 = vld [vmem:[#allocation3 + $0x38] sm:$0xff]
  %1714 = vrot.lane.b32.xlu0 %v1711, 32
  %v1715 = vpop.permute.xlu0 %1714
  %v1716 = vsel %vm25, %v1715, 0
  %1718 = vmatprep.subr.mxu0 0.0
  %1719 = vmatpush1.msra.mxu0 %v1006
  %1720 = vmatprep.subr.mxu0 0.0
  %1721 = vmatpush1.msra.mxu0 %v1007
  %1722 = vmatprep.subr.mxu0 0.0
  %1723 = vmatpush1.msra.mxu0 %v1008
  %1724 = vmatprep.subr.mxu0 0.0
  %1725 = vmatpush1.msra.mxu0 %v1009
  %1726 = vmatprep.subr.mxu0 0.0
  %1727 = vmatpush1.msra.mxu0 0.0
  %1728 = vmatprep.subr.mxu0 0.0
  %1729 = vmatpush1.msra.mxu0 0.0
  %1730 = vmatprep.subr.mxu0 0.0
  %1731 = vmatpush1.msra.mxu0 0.0
  %1732 = vmatprep.subr.mxu0 0.0
  %1733 = vmatpush1.msra.mxu0 0.0
  %1734 = vmatprep.subr.mxu0 0.0
  %1735 = vmatpush1.msra.mxu0 0.0
  %1736 = vmatprep.subr.mxu0 0.0
  %1737 = vmatpush1.msra.mxu0 0.0
  %1738 = vmatprep.subr.mxu0 0.0
  %1739 = vmatpush1.msra.mxu0 0.0
  %1740 = vmatprep.subr.mxu0 0.0
  %1741 = vmatpush1.msra.mxu0 0.0
  %1742 = vmatprep.subr.mxu0 0.0
  %1743 = vmatpush1.msra.mxu0 0.0
  %1744 = vmatprep.subr.mxu0 0.0
  %1745 = vmatpush1.msra.mxu0 0.0
  %1746 = vmatprep.subr.mxu0 0.0
  %1747 = vmatpush1.msra.mxu0 0.0
  %1748 = vmatprep.subr.mxu0 0.0
  %1749 = vmatpush1.msra.mxu0 0.0
  %1750 = vmatprep.subr.mxu0 0.0
  %1751 = vmatpush1.msra.mxu0 0.0
  %1752 = vmatprep.subr.mxu0 0.0
  %1753 = vmatpush1.msra.mxu0 0.0
  %1754 = vmatprep.subr.mxu0 0.0
  %1755 = vmatpush1.msra.mxu0 0.0
  %1756 = vmatprep.subr.mxu0 0.0
  %1757 = vmatpush1.msra.mxu0 0.0
  %1758 = vmatprep.subr.mxu0 0.0
  %1759 = vmatpush1.msra.mxu0 0.0
  %1760 = vmatprep.subr.mxu0 0.0
  %1761 = vmatpush1.msra.mxu0 0.0
  %1762 = vmatprep.subr.mxu0 0.0
  %1763 = vmatpush1.msra.mxu0 0.0
  %1764 = vmatprep.subr.mxu0 0.0
  %1765 = vmatpush1.msra.mxu0 0.0
  %1766 = vmatprep.subr.mxu0 0.0
  %1767 = vmatpush1.msra.mxu0 0.0
  %1768 = vmatprep.subr.mxu0 0.0
  %1769 = vmatpush1.msra.mxu0 0.0
  %1770 = vmatprep.subr.mxu0 0.0
  %1771 = vmatpush1.msra.mxu0 0.0
  %1772 = vmatprep.subr.mxu0 0.0
  %1773 = vmatpush1.msra.mxu0 0.0
  %1774 = vmatprep.subr.mxu0 0.0
  %1775 = vmatpush1.msra.mxu0 0.0
  %1776 = vmatprep.subr.mxu0 0.0
  %1777 = vmatpush1.msra.mxu0 0.0
  %1778 = vmatprep.subr.mxu0 0.0
  %1779 = vmatpush1.msra.mxu0 0.0
  %1780 = vmatprep.subr.mxu0 0.0
  %1781 = vmatpush1.msra.mxu0 0.0
  %1782 = vmatprep.mubr.f32.mxu0 0.0
  %1783 = vmatmul.mubr.f32.gmra.mrb[0].mxu0 %v1716
  %v1784 = vpop.f32.mrb[0].mxu0
  %v1785 = vadd.f32 0.0, %v1784
  %v1786 = vpop.f32.mrb[0].mxu0
  %1787 = vdwg.mxu0
  %v1788 = vadd.f32 %v1712, %v1785
  %v1789 = vxor.u32 %v1788, 2147483648
  %v1790 = vmul.f32 %v1789, 1.442695
  %v1791 = vpow.pop %v1790
  %v1792 = vadd.f32 %v1791, 1.0
  %v1793 = vrcp.pop %v1792
  %v1794 = vmul.f32 1.0, %v1793
  %v1795 = vtanh.pop %v1788
  %v1796 = vmul.f32 %v1794, %v1705
  %1798 = vrot.lane.b32.xlu0 %v1795, 64
  %v1799 = vpop.permute.xlu0 %1798
  %v1801 = vmul.f32 %v1794, %v1799
  %1803 = vrot.lane.b32.xlu0 %v1801, 32
  %v1804 = vpop.permute.xlu0 %1803
  %v1806 = vadd.f32 %v1796, %v1804
  %v1807 = vtanh.pop %v1806
  %1809 = vrot.lane.b32.xlu0 %v1807, 64
  %v1810 = vpop.permute.xlu0 %1809
  %v1812 = vmul.f32 %v1794, %v1810
  %1814 = vrot.lane.b32.xlu0 %v1812, 32
  %v1815 = vpop.permute.xlu0 %1814
  %1817 = vst.msk [vmem:[%s5] sm:$0xff] %vm25, %v1815
  // Predicated region
  $region22: #{linear_lstm_forward.1} parent=0 // pred_check
    _
  $region23: #{linear_lstm_forward.1} parent=0 // pred_check_branch
    %1819 = sbr.rel (0) target = $region25
  $region24: #{linear_lstm_forward.1} parent=0 // pred_region
    _
  $region25: #{linear_lstm_forward.1} parent=0 // pred_fallthru
    _
  // Predicated region
  $region26: #{linear_lstm_forward.1} parent=0 // pred_check
    _
  $region27: #{linear_lstm_forward.1} parent=0 // pred_check_branch
    %1821 = sbr.rel (0) target = $region29
  $region28: #{linear_lstm_forward.1} parent=0 // pred_region
    _
  $region29: #{linear_lstm_forward.1} parent=0 // pred_fallthru
    _

</llo_original>
